<compile_context>
chip_gen: v7x
topology: tpu7x:2x2x1
jax: 0.10.0
libtpu: 0.0.40
codegen_flags: <defaults>
</compile_context>

<pallas_src>
import jax
import jax.numpy as jnp
import numpy as np
from jax.experimental import pallas as pl
from jax.experimental.pallas import tpu as pltpu

# ----------------------------- config -------------------------------------
N_NODES = 8
N_EDGES = 16
INPUT_SIZE = 16
EDGE_DIM = 4
HIDDEN = 32
OUTPUT_SIZE = 8
N_LAYERS = 3
LN_EPS = 1e-5
OUT_PAD = 128   # lane-dense output width; sliced to OUTPUT_SIZE in the wrapper


# --------------------------- in-kernel math --------------------------------
def _erf(z):
    # Abramowitz & Stegun 7.1.26 (|err| < 1.5e-7): matches PyTorch's exact-GELU
    # erf within fp32 noise.  exp() goes to the EUP; the short polynomial is
    # VALU filler at these shapes.
    a1, a2, a3, a4, a5 = 0.254829592, -0.284496736, 1.421413741, -1.453152027, 1.061405429
    p = 0.3275911
    s = jnp.where(z >= 0.0, 1.0, -1.0)
    az = jnp.abs(z)
    t = 1.0 / (1.0 + p * az)
    poly = ((((a5 * t + a4) * t + a3) * t + a2) * t + a1) * t
    return s * (1.0 - poly * jnp.exp(-az * az))


def _gelu_exact(x):
    return 0.5 * x * (1.0 + _erf(x * (1.0 / np.sqrt(2.0))))


def _sigmoid(x):
    return 1.0 / (1.0 + jnp.exp(-x))


# ------------------------------ kernel -------------------------------------
def joiner_kernel(
    x_ref,        # [N, IN]
    e_ref,        # [L, E, H]   precomputed per-layer edge projections
    gath_ref,     # [2E, N]     rows 0:E = tgt one-hot, rows E:2E = src one-hot
    scat_ref,     # [N, E]      scatter-add matrix (tgt one-hot transposed)
    w_in_ref,     # [IN, H]
    b_in_ref,     # [1, H]
    w_kqvs_ref,   # [L, H, 4H]  packed [wk | wq | wv | wskip]
    b_kqvs_ref,   # [L, 1, 4H]  packed [bk | bq | bv | bconv]
    ln_ref,       # [L, 2, H]   [gamma; beta]
    w_out_ref,    # [H, OUT_PAD] zero-padded output projection
    out_ref,      # [N, OUT_PAD]
):
    f32 = jnp.float32
    H = w_in_ref.shape[1]
    E = e_ref.shape[1]

    # in_proj (dropout_prob defaults to 0.0 -> identity at eval)
    x = jnp.dot(x_ref[...], w_in_ref[...], preferred_element_type=f32) + b_in_ref[...]

    gath = gath_ref[...]          # [2E, N]
    scat = scat_ref[...]          # [N, E]

    n_layers = w_kqvs_ref.shape[0]
    for l in range(n_layers):     # static unroll over layers
        # one lane-dense packed projection: [N, 4H] = [N, H] @ [H, 4H]
        p = jnp.dot(x, w_kqvs_ref[l], preferred_element_type=f32) + b_kqvs_ref[l]

        # one lane-dense gather for both endpoints: [2E, 4H]
        g = jnp.dot(gath, p, preferred_element_type=f32)
        p_i = g[:E]               # target-gathered packed features
        p_j = g[E:]               # source-gathered packed features

        e = e_ref[l]              # [E, H]
        k_i = p_i[:, 0 * H:1 * H] + e
        q_j = p_j[:, 1 * H:2 * H] + e
        v_j = p_j[:, 2 * H:3 * H] + e

        msg = _sigmoid(k_i + q_j) * v_j                          # [E, H]
        # scatter-add + skip connection (bconv folded into the packed bias slot 3)
        h = jnp.dot(scat, msg, preferred_element_type=f32) + p[:, 3 * H:4 * H]

        # LayerNorm over hidden dim
        mu = jnp.mean(h, axis=-1, keepdims=True)
        var = jnp.mean((h - mu) ** 2, axis=-1, keepdims=True)
        hn = (h - mu) * jax.lax.rsqrt(var + LN_EPS)
        ln_l = ln_ref[l]                                          # [2, H]
        hn = hn * ln_l[0:1, :] + ln_l[1:2, :]

        # exact GELU
        x = _gelu_exact(hn)

    # out_proj (no bias), lane-dense padded store
    out_ref[...] = jnp.dot(x, w_out_ref[...], preferred_element_type=f32)


# ------------------------------ wrapper -------------------------------------
@jax.jit
def joiner_forward(x, edge_index, edge_attr, params):
    # module glue: edge_dim == 1 -> reshape [E] -> [E, 1]
    if edge_attr.ndim == 1:
        edge_attr = edge_attr.reshape(edge_attr.shape[0], 1)

    n, in_dim = x.shape
    e_cnt = edge_attr.shape[0]
    n_layers = params["wk"].shape[0]

    src, tgt = edge_index[0], edge_index[1]
    node_ids = jnp.arange(n, dtype=edge_index.dtype)
    tgt_oh = (tgt[:, None] == node_ids[None, :]).astype(jnp.float32)   # [E, N]
    src_oh = (src[:, None] == node_ids[None, :]).astype(jnp.float32)   # [E, N]
    gather_oh = jnp.concatenate([tgt_oh, src_oh], axis=0)              # [2E, N]
    scat = tgt_oh.T                                                    # [N, E]

    # hoist edge projection (independent of x): [L, E, H]
    e_all = jnp.einsum("ed,ldh->leh", edge_attr, params["we"]) + params["be"]

    # pack node projections / biases / LN params (XLA fuses this cheap glue)
    w_kqvs = jnp.concatenate(
        [params["wk"], params["wq"], params["wv"], params["wskip"]], axis=-1)   # [L, H, 4H]
    b_kqvs = jnp.concatenate(
        [params["bk"], params["bq"], params["bv"], params["bconv"]], axis=-1)   # [L, 1, 4H]
    ln = jnp.concatenate([params["gamma"], params["beta"]], axis=1)             # [L, 2, H]
    w_out_pad = jnp.zeros((HIDDEN, OUT_PAD), jnp.float32).at[:, :OUTPUT_SIZE].set(
        params["w_out"])

    args = [x, e_all, gather_oh, scat,
            params["w_in"], params["b_in"],
            w_kqvs, b_kqvs, ln, w_out_pad]

    flops = int(
        2 * n * in_dim * HIDDEN
        + n_layers * (2 * n * HIDDEN * 4 * HIDDEN            # packed projection
                      + 2 * (2 * e_cnt) * n * 4 * HIDDEN     # fused gather
                      + 2 * n * e_cnt * HIDDEN)              # scatter-add
        + 2 * n * HIDDEN * OUT_PAD)
    transcendentals = int(n_layers * (e_cnt * HIDDEN + n * HIDDEN))
    bytes_accessed = int(4 * (sum(int(np.prod(a.shape)) for a in args) + n * OUT_PAD))

    vmem_spec = pl.BlockSpec(memory_space=pltpu.MemorySpace.VMEM)
    out = pl.pallas_call(
        joiner_kernel,
        out_shape=jax.ShapeDtypeStruct((n, OUT_PAD), jnp.float32),
        in_specs=[vmem_spec] * len(args),
        out_specs=vmem_spec,
        cost_estimate=pl.CostEstimate(
            flops=flops, transcendentals=transcendentals, bytes_accessed=bytes_accessed),
    )(*args)
    return out[:, :OUTPUT_SIZE]


# --------------------------- pure-JAX reference -----------------------------
def reference_forward(x, edge_index, edge_attr, params):
    if edge_attr.ndim == 1:
        edge_attr = edge_attr.reshape(edge_attr.shape[0], 1)
    src, tgt = edge_index[0], edge_index[1]
    h = x @ params["w_in"] + params["b_in"]
    for l in range(params["wk"].shape[0]):
        k = h @ params["wk"][l] + params["bk"][l]
        q = h @ params["wq"][l] + params["bq"][l]
        v = h @ params["wv"][l] + params["bv"][l]
        e = edge_attr @ params["we"][l] + params["be"][l]
        k_i = k[tgt] + e
        q_j = q[src] + e
        v_j = v[src] + e
        msg = jax.nn.sigmoid(k_i + q_j) * v_j
        agg = jnp.zeros_like(h).at[tgt].add(msg)
        hh = agg + h @ params["wskip"][l] + params["bconv"][l]
        mu = hh.mean(-1, keepdims=True)
        var = ((hh - mu) ** 2).mean(-1, keepdims=True)
        hn = (hh - mu) / jnp.sqrt(var + LN_EPS) * params["gamma"][l] + params["beta"][l]
        h = jax.nn.gelu(hn, approximate=False)
    return h @ params["w_out"]


# ------------------------------- params -------------------------------------
def init_params(key):
    ks = jax.random.split(key, 16)

    def lin(k, fan_in, fan_out):
        # deterministic synthetic init (stored as [in, out]; y = x @ W + b)
        return jax.random.normal(k, (fan_in, fan_out), jnp.float32) / np.sqrt(fan_in)

    L, H, De = N_LAYERS, HIDDEN, EDGE_DIM
    params = {
        "w_in": lin(ks[0], INPUT_SIZE, H),
        "b_in": 0.01 * jax.random.normal(ks[1], (1, H), jnp.float32),
        "wk": jnp.stack([lin(k, H, H) for k in jax.random.split(ks[2], L)]),
        "bk": 0.01 * jax.random.normal(ks[3], (L, 1, H), jnp.float32),
        "wq": jnp.stack([lin(k, H, H) for k in jax.random.split(ks[4], L)]),
        "bq": 0.01 * jax.random.normal(ks[5], (L, 1, H), jnp.float32),
        "wv": jnp.stack([lin(k, H, H) for k in jax.random.split(ks[6], L)]),
        "bv": 0.01 * jax.random.normal(ks[7], (L, 1, H), jnp.float32),
        "we": jnp.stack([lin(k, De, H) for k in jax.random.split(ks[8], L)]),
        "be": 0.01 * jax.random.normal(ks[9], (L, 1, H), jnp.float32),
        "wskip": jnp.stack([lin(k, H, H) for k in jax.random.split(ks[10], L)]),
        "bconv": 0.01 * jax.random.normal(ks[11], (L, 1, H), jnp.float32),
        "gamma": jnp.ones((L, 1, H), jnp.float32)
        + 0.05 * jax.random.normal(ks[12], (L, 1, H), jnp.float32),
        "beta": 0.05 * jax.random.normal(ks[13], (L, 1, H), jnp.float32),
        "w_out": lin(ks[14], H, OUTPUT_SIZE),
    }
    return params


# --------------------------------- main --------------------------------------
if __name__ == "__main__":
    key = jax.random.PRNGKey(0)
    k_x, k_ei, k_ea, k_p = jax.random.split(key, 4)

    x = jax.random.normal(k_x, (N_NODES, INPUT_SIZE), jnp.float32)
    edge_index = jax.random.randint(k_ei, (2, N_EDGES), 0, N_NODES, dtype=jnp.int32)
    edge_attr = jax.random.normal(k_ea, (N_EDGES, EDGE_DIM), jnp.float32)
    params = init_params(k_p)

    out = joiner_forward(x, edge_index, edge_attr, params)
    out = jax.block_until_ready(out)

    ref = reference_forward(x, edge_index, edge_attr, params)
    np.testing.assert_allclose(np.asarray(out), np.asarray(ref), rtol=1e-3, atol=1e-3)

    print("KERNEL_OK")
</pallas_src>

<mosaic_0001>
module attributes {stable_mosaic.version = 11 : i64} {
  func.func @joiner_kernel(%arg0: memref<8x16xf32, #tpu.memory_space<vmem>>, %arg1: memref<3x16x32xf32, #tpu.memory_space<vmem>>, %arg2: memref<32x8xf32, #tpu.memory_space<vmem>>, %arg3: memref<8x16xf32, #tpu.memory_space<vmem>>, %arg4: memref<16x32xf32, #tpu.memory_space<vmem>>, %arg5: memref<1x32xf32, #tpu.memory_space<vmem>>, %arg6: memref<3x32x128xf32, #tpu.memory_space<vmem>>, %arg7: memref<3x1x128xf32, #tpu.memory_space<vmem>>, %arg8: memref<3x2x32xf32, #tpu.memory_space<vmem>>, %arg9: memref<32x128xf32, #tpu.memory_space<vmem>>, %arg10: memref<8x128xf32, #tpu.memory_space<vmem>>) attributes {dimension_semantics = [], scalar_prefetch = 0 : i64, scratch_operands = 0 : i64, tpu.core_type = #tpu.core_type<tc>} {
    %c0 = arith.constant 0 : index
    %c0_0 = arith.constant 0 : index
    %0 = vector.load %arg0[%c0, %c0_0] : memref<8x16xf32, #tpu.memory_space<vmem>>, vector<8x16xf32>
    %c0_1 = arith.constant 0 : index
    %c0_2 = arith.constant 0 : index
    %1 = vector.load %arg4[%c0_1, %c0_2] : memref<16x32xf32, #tpu.memory_space<vmem>>, vector<16x32xf32>
    %cst = arith.constant dense<0.000000e+00> : vector<8x32xf32>
    %2 = tpu.matmul %0, %1, %cst {dimension_numbers = #tpu.dot_dimension_numbers<[1], [0], [0], [1], [0, 0, 1, 1], [], []>} : vector<8x16xf32>, vector<16x32xf32>, vector<8x32xf32> -> vector<8x32xf32>
    %c0_3 = arith.constant 0 : index
    %c0_4 = arith.constant 0 : index
    %3 = vector.load %arg5[%c0_3, %c0_4] : memref<1x32xf32, #tpu.memory_space<vmem>>, vector<1x32xf32>
    %4 = vector.broadcast %3 : vector<1x32xf32> to vector<8x32xf32>
    %5 = arith.addf %2, %4 : vector<8x32xf32>
    %c0_5 = arith.constant 0 : index
    %c0_6 = arith.constant 0 : index
    %6 = vector.load %arg2[%c0_5, %c0_6] : memref<32x8xf32, #tpu.memory_space<vmem>>, vector<32x8xf32>
    %c0_7 = arith.constant 0 : index
    %c0_8 = arith.constant 0 : index
    %7 = vector.load %arg3[%c0_7, %c0_8] : memref<8x16xf32, #tpu.memory_space<vmem>>, vector<8x16xf32>
    %c0_9 = arith.constant 0 : index
    %c0_10 = arith.constant 0 : index
    %c0_11 = arith.constant 0 : index
    %8 = vector.load %arg6[%c0_9, %c0_10, %c0_11] : memref<3x32x128xf32, #tpu.memory_space<vmem>>, vector<1x32x128xf32>
    %9 = vector.shape_cast %8 : vector<1x32x128xf32> to vector<32x128xf32>
    %cst_12 = arith.constant dense<0.000000e+00> : vector<8x128xf32>
    %10 = tpu.matmul %5, %9, %cst_12 {dimension_numbers = #tpu.dot_dimension_numbers<[1], [0], [0], [1], [0, 0, 1, 1], [], []>} : vector<8x32xf32>, vector<32x128xf32>, vector<8x128xf32> -> vector<8x128xf32>
    %c0_13 = arith.constant 0 : index
    %c0_14 = arith.constant 0 : index
    %c0_15 = arith.constant 0 : index
    %11 = vector.load %arg7[%c0_13, %c0_14, %c0_15] : memref<3x1x128xf32, #tpu.memory_space<vmem>>, vector<1x1x128xf32>
    %12 = vector.shape_cast %11 : vector<1x1x128xf32> to vector<1x128xf32>
    %13 = vector.broadcast %12 : vector<1x128xf32> to vector<8x128xf32>
    %14 = arith.addf %10, %13 : vector<8x128xf32>
    %cst_16 = arith.constant dense<0.000000e+00> : vector<32x128xf32>
    %15 = tpu.matmul %6, %14, %cst_16 {dimension_numbers = #tpu.dot_dimension_numbers<[1], [0], [0], [1], [0, 0, 1, 1], [], []>} : vector<32x8xf32>, vector<8x128xf32>, vector<32x128xf32> -> vector<32x128xf32>
    %16 = vector.extract_strided_slice %15 {offsets = [0, 0], sizes = [16, 128], strides = [1, 1]} : vector<32x128xf32> to vector<16x128xf32>
    %17 = vector.extract_strided_slice %15 {offsets = [16, 0], sizes = [16, 128], strides = [1, 1]} : vector<32x128xf32> to vector<16x128xf32>
    %c0_17 = arith.constant 0 : index
    %c0_18 = arith.constant 0 : index
    %c0_19 = arith.constant 0 : index
    %18 = vector.load %arg1[%c0_17, %c0_18, %c0_19] : memref<3x16x32xf32, #tpu.memory_space<vmem>>, vector<1x16x32xf32>
    %19 = vector.shape_cast %18 : vector<1x16x32xf32> to vector<16x32xf32>
    %20 = vector.extract_strided_slice %16 {offsets = [0, 0], sizes = [16, 32], strides = [1, 1]} : vector<16x128xf32> to vector<16x32xf32>
    %21 = arith.addf %20, %19 : vector<16x32xf32>
    %22 = vector.extract_strided_slice %17 {offsets = [0, 32], sizes = [16, 32], strides = [1, 1]} : vector<16x128xf32> to vector<16x32xf32>
    %23 = arith.addf %22, %19 : vector<16x32xf32>
    %24 = vector.extract_strided_slice %17 {offsets = [0, 64], sizes = [16, 32], strides = [1, 1]} : vector<16x128xf32> to vector<16x32xf32>
    %25 = arith.addf %24, %19 : vector<16x32xf32>
    %26 = arith.addf %21, %23 : vector<16x32xf32>
    %cst_20 = arith.constant 0.000000e+00 : f32
    %27 = vector.broadcast %cst_20 : f32 to vector<16x32xf32>
    %28 = arith.subf %27, %26 : vector<16x32xf32>
    %29 = math.exp %28 : vector<16x32xf32>
    %cst_21 = arith.constant 1.000000e+00 : f32
    %30 = vector.broadcast %cst_21 : f32 to vector<16x32xf32>
    %31 = arith.addf %30, %29 : vector<16x32xf32>
    %cst_22 = arith.constant 1.000000e+00 : f32
    %32 = vector.broadcast %cst_22 : f32 to vector<16x32xf32>
    %33 = arith.divf %32, %31 : vector<16x32xf32>
    %34 = arith.mulf %33, %25 : vector<16x32xf32>
    %cst_23 = arith.constant dense<0.000000e+00> : vector<8x32xf32>
    %35 = tpu.matmul %7, %34, %cst_23 {dimension_numbers = #tpu.dot_dimension_numbers<[1], [0], [0], [1], [0, 0, 1, 1], [], []>} : vector<8x16xf32>, vector<16x32xf32>, vector<8x32xf32> -> vector<8x32xf32>
    %36 = vector.extract_strided_slice %14 {offsets = [0, 96], sizes = [8, 32], strides = [1, 1]} : vector<8x128xf32> to vector<8x32xf32>
    %37 = arith.addf %35, %36 : vector<8x32xf32>
    %cst_24 = arith.constant dense<0.000000e+00> : vector<8xf32>
    %38 = vector.multi_reduction <add>, %37, %cst_24 [1] : vector<8x32xf32> to vector<8xf32>
    %39 = vector.shape_cast %38 : vector<8xf32> to vector<8x1xf32>
    %cst_25 = arith.constant 3.200000e+01 : f32
    %40 = vector.broadcast %cst_25 : f32 to vector<8x1xf32>
    %41 = arith.divf %39, %40 : vector<8x1xf32>
    %42 = vector.broadcast %41 : vector<8x1xf32> to vector<8x32xf32>
    %43 = arith.subf %37, %42 : vector<8x32xf32>
    %44 = arith.mulf %43, %43 : vector<8x32xf32>
    %cst_26 = arith.constant dense<0.000000e+00> : vector<8xf32>
    %45 = vector.multi_reduction <add>, %44, %cst_26 [1] : vector<8x32xf32> to vector<8xf32>
    %46 = vector.shape_cast %45 : vector<8xf32> to vector<8x1xf32>
    %cst_27 = arith.constant 3.200000e+01 : f32
    %47 = vector.broadcast %cst_27 : f32 to vector<8x1xf32>
    %48 = arith.divf %46, %47 : vector<8x1xf32>
    %49 = vector.broadcast %41 : vector<8x1xf32> to vector<8x32xf32>
    %50 = arith.subf %37, %49 : vector<8x32xf32>
    %cst_28 = arith.constant 9.99999974E-6 : f32
    %51 = vector.broadcast %cst_28 : f32 to vector<8x1xf32>
    %52 = arith.addf %48, %51 : vector<8x1xf32>
    %53 = math.rsqrt %52 : vector<8x1xf32>
    %54 = vector.broadcast %53 : vector<8x1xf32> to vector<8x32xf32>
    %55 = arith.mulf %50, %54 : vector<8x32xf32>
    %c0_29 = arith.constant 0 : index
    %c0_30 = arith.constant 0 : index
    %c0_31 = arith.constant 0 : index
    %56 = vector.load %arg8[%c0_29, %c0_30, %c0_31] : memref<3x2x32xf32, #tpu.memory_space<vmem>>, vector<1x2x32xf32>
    %57 = vector.shape_cast %56 : vector<1x2x32xf32> to vector<2x32xf32>
    %58 = vector.extract_strided_slice %57 {offsets = [0, 0], sizes = [1, 32], strides = [1, 1]} : vector<2x32xf32> to vector<1x32xf32>
    %59 = vector.broadcast %58 : vector<1x32xf32> to vector<8x32xf32>
    %60 = arith.mulf %55, %59 : vector<8x32xf32>
    %61 = vector.extract_strided_slice %57 {offsets = [1, 0], sizes = [1, 32], strides = [1, 1]} : vector<2x32xf32> to vector<1x32xf32>
    %62 = vector.broadcast %61 : vector<1x32xf32> to vector<8x32xf32>
    %63 = arith.addf %60, %62 : vector<8x32xf32>
    %cst_32 = arith.constant 5.000000e-01 : f32
    %64 = vector.broadcast %cst_32 : f32 to vector<8x32xf32>
    %65 = arith.mulf %64, %63 : vector<8x32xf32>
    %cst_33 = arith.constant 0.707106769 : f32
    %66 = vector.broadcast %cst_33 : f32 to vector<8x32xf32>
    %67 = arith.mulf %63, %66 : vector<8x32xf32>
    %cst_34 = arith.constant 0.000000e+00 : f32
    %68 = vector.broadcast %cst_34 : f32 to vector<8x32xf32>
    %69 = arith.cmpf oge, %67, %68 : vector<8x32xf32>
    %cst_35 = arith.constant 1.000000e+00 : f32
    %cst_36 = arith.constant -1.000000e+00 : f32
    %70 = vector.broadcast %cst_35 : f32 to vector<8x32xf32>
    %71 = vector.broadcast %cst_36 : f32 to vector<8x32xf32>
    %72 = arith.select %69, %70, %71 : vector<8x32xi1>, vector<8x32xf32>
    %73 = math.absf %67 : vector<8x32xf32>
    %cst_37 = arith.constant 0.327591091 : f32
    %74 = vector.broadcast %cst_37 : f32 to vector<8x32xf32>
    %75 = arith.mulf %74, %73 : vector<8x32xf32>
    %cst_38 = arith.constant 1.000000e+00 : f32
    %76 = vector.broadcast %cst_38 : f32 to vector<8x32xf32>
    %77 = arith.addf %76, %75 : vector<8x32xf32>
    %cst_39 = arith.constant 1.000000e+00 : f32
    %78 = vector.broadcast %cst_39 : f32 to vector<8x32xf32>
    %79 = arith.divf %78, %77 : vector<8x32xf32>
    %cst_40 = arith.constant 1.06140542 : f32
    %80 = vector.broadcast %cst_40 : f32 to vector<8x32xf32>
    %81 = arith.mulf %80, %79 : vector<8x32xf32>
    %cst_41 = arith.constant -1.45315206 : f32
    %82 = vector.broadcast %cst_41 : f32 to vector<8x32xf32>
    %83 = arith.addf %81, %82 : vector<8x32xf32>
    %84 = arith.mulf %83, %79 : vector<8x32xf32>
    %cst_42 = arith.constant 1.42141378 : f32
    %85 = vector.broadcast %cst_42 : f32 to vector<8x32xf32>
    %86 = arith.addf %84, %85 : vector<8x32xf32>
    %87 = arith.mulf %86, %79 : vector<8x32xf32>
    %cst_43 = arith.constant -0.284496725 : f32
    %88 = vector.broadcast %cst_43 : f32 to vector<8x32xf32>
    %89 = arith.addf %87, %88 : vector<8x32xf32>
    %90 = arith.mulf %89, %79 : vector<8x32xf32>
    %cst_44 = arith.constant 0.254829586 : f32
    %91 = vector.broadcast %cst_44 : f32 to vector<8x32xf32>
    %92 = arith.addf %90, %91 : vector<8x32xf32>
    %93 = arith.mulf %92, %79 : vector<8x32xf32>
    %cst_45 = arith.constant 0.000000e+00 : f32
    %94 = vector.broadcast %cst_45 : f32 to vector<8x32xf32>
    %95 = arith.subf %94, %73 : vector<8x32xf32>
    %96 = arith.mulf %95, %73 : vector<8x32xf32>
    %97 = math.exp %96 : vector<8x32xf32>
    %98 = arith.mulf %93, %97 : vector<8x32xf32>
    %cst_46 = arith.constant 1.000000e+00 : f32
    %99 = vector.broadcast %cst_46 : f32 to vector<8x32xf32>
    %100 = arith.subf %99, %98 : vector<8x32xf32>
    %101 = arith.mulf %72, %100 : vector<8x32xf32>
    %cst_47 = arith.constant 1.000000e+00 : f32
    %102 = vector.broadcast %cst_47 : f32 to vector<8x32xf32>
    %103 = arith.addf %102, %101 : vector<8x32xf32>
    %104 = arith.mulf %65, %103 : vector<8x32xf32>
    %c1 = arith.constant 1 : index
    %c0_48 = arith.constant 0 : index
    %c0_49 = arith.constant 0 : index
    %105 = vector.load %arg6[%c1, %c0_48, %c0_49] : memref<3x32x128xf32, #tpu.memory_space<vmem>>, vector<1x32x128xf32>
    %106 = vector.shape_cast %105 : vector<1x32x128xf32> to vector<32x128xf32>
    %cst_50 = arith.constant dense<0.000000e+00> : vector<8x128xf32>
    %107 = tpu.matmul %104, %106, %cst_50 {dimension_numbers = #tpu.dot_dimension_numbers<[1], [0], [0], [1], [0, 0, 1, 1], [], []>} : vector<8x32xf32>, vector<32x128xf32>, vector<8x128xf32> -> vector<8x128xf32>
    %c1_51 = arith.constant 1 : index
    %c0_52 = arith.constant 0 : index
    %c0_53 = arith.constant 0 : index
    %108 = vector.load %arg7[%c1_51, %c0_52, %c0_53] : memref<3x1x128xf32, #tpu.memory_space<vmem>>, vector<1x1x128xf32>
    %109 = vector.shape_cast %108 : vector<1x1x128xf32> to vector<1x128xf32>
    %110 = vector.broadcast %109 : vector<1x128xf32> to vector<8x128xf32>
    %111 = arith.addf %107, %110 : vector<8x128xf32>
    %cst_54 = arith.constant dense<0.000000e+00> : vector<32x128xf32>
    %112 = tpu.matmul %6, %111, %cst_54 {dimension_numbers = #tpu.dot_dimension_numbers<[1], [0], [0], [1], [0, 0, 1, 1], [], []>} : vector<32x8xf32>, vector<8x128xf32>, vector<32x128xf32> -> vector<32x128xf32>
    %113 = vector.extract_strided_slice %112 {offsets = [0, 0], sizes = [16, 128], strides = [1, 1]} : vector<32x128xf32> to vector<16x128xf32>
    %114 = vector.extract_strided_slice %112 {offsets = [16, 0], sizes = [16, 128], strides = [1, 1]} : vector<32x128xf32> to vector<16x128xf32>
    %c1_55 = arith.constant 1 : index
    %c0_56 = arith.constant 0 : index
    %c0_57 = arith.constant 0 : index
    %115 = vector.load %arg1[%c1_55, %c0_56, %c0_57] : memref<3x16x32xf32, #tpu.memory_space<vmem>>, vector<1x16x32xf32>
    %116 = vector.shape_cast %115 : vector<1x16x32xf32> to vector<16x32xf32>
    %117 = vector.extract_strided_slice %113 {offsets = [0, 0], sizes = [16, 32], strides = [1, 1]} : vector<16x128xf32> to vector<16x32xf32>
    %118 = arith.addf %117, %116 : vector<16x32xf32>
    %119 = vector.extract_strided_slice %114 {offsets = [0, 32], sizes = [16, 32], strides = [1, 1]} : vector<16x128xf32> to vector<16x32xf32>
    %120 = arith.addf %119, %116 : vector<16x32xf32>
    %121 = vector.extract_strided_slice %114 {offsets = [0, 64], sizes = [16, 32], strides = [1, 1]} : vector<16x128xf32> to vector<16x32xf32>
    %122 = arith.addf %121, %116 : vector<16x32xf32>
    %123 = arith.addf %118, %120 : vector<16x32xf32>
    %cst_58 = arith.constant 0.000000e+00 : f32
    %124 = vector.broadcast %cst_58 : f32 to vector<16x32xf32>
    %125 = arith.subf %124, %123 : vector<16x32xf32>
    %126 = math.exp %125 : vector<16x32xf32>
    %cst_59 = arith.constant 1.000000e+00 : f32
    %127 = vector.broadcast %cst_59 : f32 to vector<16x32xf32>
    %128 = arith.addf %127, %126 : vector<16x32xf32>
    %cst_60 = arith.constant 1.000000e+00 : f32
    %129 = vector.broadcast %cst_60 : f32 to vector<16x32xf32>
    %130 = arith.divf %129, %128 : vector<16x32xf32>
    %131 = arith.mulf %130, %122 : vector<16x32xf32>
    %cst_61 = arith.constant dense<0.000000e+00> : vector<8x32xf32>
    %132 = tpu.matmul %7, %131, %cst_61 {dimension_numbers = #tpu.dot_dimension_numbers<[1], [0], [0], [1], [0, 0, 1, 1], [], []>} : vector<8x16xf32>, vector<16x32xf32>, vector<8x32xf32> -> vector<8x32xf32>
    %133 = vector.extract_strided_slice %111 {offsets = [0, 96], sizes = [8, 32], strides = [1, 1]} : vector<8x128xf32> to vector<8x32xf32>
    %134 = arith.addf %132, %133 : vector<8x32xf32>
    %cst_62 = arith.constant dense<0.000000e+00> : vector<8xf32>
    %135 = vector.multi_reduction <add>, %134, %cst_62 [1] : vector<8x32xf32> to vector<8xf32>
    %136 = vector.shape_cast %135 : vector<8xf32> to vector<8x1xf32>
    %cst_63 = arith.constant 3.200000e+01 : f32
    %137 = vector.broadcast %cst_63 : f32 to vector<8x1xf32>
    %138 = arith.divf %136, %137 : vector<8x1xf32>
    %139 = vector.broadcast %138 : vector<8x1xf32> to vector<8x32xf32>
    %140 = arith.subf %134, %139 : vector<8x32xf32>
    %141 = arith.mulf %140, %140 : vector<8x32xf32>
    %cst_64 = arith.constant dense<0.000000e+00> : vector<8xf32>
    %142 = vector.multi_reduction <add>, %141, %cst_64 [1] : vector<8x32xf32> to vector<8xf32>
    %143 = vector.shape_cast %142 : vector<8xf32> to vector<8x1xf32>
    %cst_65 = arith.constant 3.200000e+01 : f32
    %144 = vector.broadcast %cst_65 : f32 to vector<8x1xf32>
    %145 = arith.divf %143, %144 : vector<8x1xf32>
    %146 = vector.broadcast %138 : vector<8x1xf32> to vector<8x32xf32>
    %147 = arith.subf %134, %146 : vector<8x32xf32>
    %cst_66 = arith.constant 9.99999974E-6 : f32
    %148 = vector.broadcast %cst_66 : f32 to vector<8x1xf32>
    %149 = arith.addf %145, %148 : vector<8x1xf32>
    %150 = math.rsqrt %149 : vector<8x1xf32>
    %151 = vector.broadcast %150 : vector<8x1xf32> to vector<8x32xf32>
    %152 = arith.mulf %147, %151 : vector<8x32xf32>
    %c1_67 = arith.constant 1 : index
    %c0_68 = arith.constant 0 : index
    %c0_69 = arith.constant 0 : index
    %153 = vector.load %arg8[%c1_67, %c0_68, %c0_69] : memref<3x2x32xf32, #tpu.memory_space<vmem>>, vector<1x2x32xf32>
    %154 = vector.shape_cast %153 : vector<1x2x32xf32> to vector<2x32xf32>
    %155 = vector.extract_strided_slice %154 {offsets = [0, 0], sizes = [1, 32], strides = [1, 1]} : vector<2x32xf32> to vector<1x32xf32>
    %156 = vector.broadcast %155 : vector<1x32xf32> to vector<8x32xf32>
    %157 = arith.mulf %152, %156 : vector<8x32xf32>
    %158 = vector.extract_strided_slice %154 {offsets = [1, 0], sizes = [1, 32], strides = [1, 1]} : vector<2x32xf32> to vector<1x32xf32>
    %159 = vector.broadcast %158 : vector<1x32xf32> to vector<8x32xf32>
    %160 = arith.addf %157, %159 : vector<8x32xf32>
    %cst_70 = arith.constant 5.000000e-01 : f32
    %161 = vector.broadcast %cst_70 : f32 to vector<8x32xf32>
    %162 = arith.mulf %161, %160 : vector<8x32xf32>
    %cst_71 = arith.constant 0.707106769 : f32
    %163 = vector.broadcast %cst_71 : f32 to vector<8x32xf32>
    %164 = arith.mulf %160, %163 : vector<8x32xf32>
    %cst_72 = arith.constant 0.000000e+00 : f32
    %165 = vector.broadcast %cst_72 : f32 to vector<8x32xf32>
    %166 = arith.cmpf oge, %164, %165 : vector<8x32xf32>
    %cst_73 = arith.constant 1.000000e+00 : f32
    %cst_74 = arith.constant -1.000000e+00 : f32
    %167 = vector.broadcast %cst_73 : f32 to vector<8x32xf32>
    %168 = vector.broadcast %cst_74 : f32 to vector<8x32xf32>
    %169 = arith.select %166, %167, %168 : vector<8x32xi1>, vector<8x32xf32>
    %170 = math.absf %164 : vector<8x32xf32>
    %cst_75 = arith.constant 0.327591091 : f32
    %171 = vector.broadcast %cst_75 : f32 to vector<8x32xf32>
    %172 = arith.mulf %171, %170 : vector<8x32xf32>
    %cst_76 = arith.constant 1.000000e+00 : f32
    %173 = vector.broadcast %cst_76 : f32 to vector<8x32xf32>
    %174 = arith.addf %173, %172 : vector<8x32xf32>
    %cst_77 = arith.constant 1.000000e+00 : f32
    %175 = vector.broadcast %cst_77 : f32 to vector<8x32xf32>
    %176 = arith.divf %175, %174 : vector<8x32xf32>
    %cst_78 = arith.constant 1.06140542 : f32
    %177 = vector.broadcast %cst_78 : f32 to vector<8x32xf32>
    %178 = arith.mulf %177, %176 : vector<8x32xf32>
    %cst_79 = arith.constant -1.45315206 : f32
    %179 = vector.broadcast %cst_79 : f32 to vector<8x32xf32>
    %180 = arith.addf %178, %179 : vector<8x32xf32>
    %181 = arith.mulf %180, %176 : vector<8x32xf32>
    %cst_80 = arith.constant 1.42141378 : f32
    %182 = vector.broadcast %cst_80 : f32 to vector<8x32xf32>
    %183 = arith.addf %181, %182 : vector<8x32xf32>
    %184 = arith.mulf %183, %176 : vector<8x32xf32>
    %cst_81 = arith.constant -0.284496725 : f32
    %185 = vector.broadcast %cst_81 : f32 to vector<8x32xf32>
    %186 = arith.addf %184, %185 : vector<8x32xf32>
    %187 = arith.mulf %186, %176 : vector<8x32xf32>
    %cst_82 = arith.constant 0.254829586 : f32
    %188 = vector.broadcast %cst_82 : f32 to vector<8x32xf32>
    %189 = arith.addf %187, %188 : vector<8x32xf32>
    %190 = arith.mulf %189, %176 : vector<8x32xf32>
    %cst_83 = arith.constant 0.000000e+00 : f32
    %191 = vector.broadcast %cst_83 : f32 to vector<8x32xf32>
    %192 = arith.subf %191, %170 : vector<8x32xf32>
    %193 = arith.mulf %192, %170 : vector<8x32xf32>
    %194 = math.exp %193 : vector<8x32xf32>
    %195 = arith.mulf %190, %194 : vector<8x32xf32>
    %cst_84 = arith.constant 1.000000e+00 : f32
    %196 = vector.broadcast %cst_84 : f32 to vector<8x32xf32>
    %197 = arith.subf %196, %195 : vector<8x32xf32>
    %198 = arith.mulf %169, %197 : vector<8x32xf32>
    %cst_85 = arith.constant 1.000000e+00 : f32
    %199 = vector.broadcast %cst_85 : f32 to vector<8x32xf32>
    %200 = arith.addf %199, %198 : vector<8x32xf32>
    %201 = arith.mulf %162, %200 : vector<8x32xf32>
    %c2 = arith.constant 2 : index
    %c0_86 = arith.constant 0 : index
    %c0_87 = arith.constant 0 : index
    %202 = vector.load %arg6[%c2, %c0_86, %c0_87] : memref<3x32x128xf32, #tpu.memory_space<vmem>>, vector<1x32x128xf32>
    %203 = vector.shape_cast %202 : vector<1x32x128xf32> to vector<32x128xf32>
    %cst_88 = arith.constant dense<0.000000e+00> : vector<8x128xf32>
    %204 = tpu.matmul %201, %203, %cst_88 {dimension_numbers = #tpu.dot_dimension_numbers<[1], [0], [0], [1], [0, 0, 1, 1], [], []>} : vector<8x32xf32>, vector<32x128xf32>, vector<8x128xf32> -> vector<8x128xf32>
    %c2_89 = arith.constant 2 : index
    %c0_90 = arith.constant 0 : index
    %c0_91 = arith.constant 0 : index
    %205 = vector.load %arg7[%c2_89, %c0_90, %c0_91] : memref<3x1x128xf32, #tpu.memory_space<vmem>>, vector<1x1x128xf32>
    %206 = vector.shape_cast %205 : vector<1x1x128xf32> to vector<1x128xf32>
    %207 = vector.broadcast %206 : vector<1x128xf32> to vector<8x128xf32>
    %208 = arith.addf %204, %207 : vector<8x128xf32>
    %cst_92 = arith.constant dense<0.000000e+00> : vector<32x128xf32>
    %209 = tpu.matmul %6, %208, %cst_92 {dimension_numbers = #tpu.dot_dimension_numbers<[1], [0], [0], [1], [0, 0, 1, 1], [], []>} : vector<32x8xf32>, vector<8x128xf32>, vector<32x128xf32> -> vector<32x128xf32>
    %210 = vector.extract_strided_slice %209 {offsets = [0, 0], sizes = [16, 128], strides = [1, 1]} : vector<32x128xf32> to vector<16x128xf32>
    %211 = vector.extract_strided_slice %209 {offsets = [16, 0], sizes = [16, 128], strides = [1, 1]} : vector<32x128xf32> to vector<16x128xf32>
    %c2_93 = arith.constant 2 : index
    %c0_94 = arith.constant 0 : index
    %c0_95 = arith.constant 0 : index
    %212 = vector.load %arg1[%c2_93, %c0_94, %c0_95] : memref<3x16x32xf32, #tpu.memory_space<vmem>>, vector<1x16x32xf32>
    %213 = vector.shape_cast %212 : vector<1x16x32xf32> to vector<16x32xf32>
    %214 = vector.extract_strided_slice %210 {offsets = [0, 0], sizes = [16, 32], strides = [1, 1]} : vector<16x128xf32> to vector<16x32xf32>
    %215 = arith.addf %214, %213 : vector<16x32xf32>
    %216 = vector.extract_strided_slice %211 {offsets = [0, 32], sizes = [16, 32], strides = [1, 1]} : vector<16x128xf32> to vector<16x32xf32>
    %217 = arith.addf %216, %213 : vector<16x32xf32>
    %218 = vector.extract_strided_slice %211 {offsets = [0, 64], sizes = [16, 32], strides = [1, 1]} : vector<16x128xf32> to vector<16x32xf32>
    %219 = arith.addf %218, %213 : vector<16x32xf32>
    %220 = arith.addf %215, %217 : vector<16x32xf32>
    %cst_96 = arith.constant 0.000000e+00 : f32
    %221 = vector.broadcast %cst_96 : f32 to vector<16x32xf32>
    %222 = arith.subf %221, %220 : vector<16x32xf32>
    %223 = math.exp %222 : vector<16x32xf32>
    %cst_97 = arith.constant 1.000000e+00 : f32
    %224 = vector.broadcast %cst_97 : f32 to vector<16x32xf32>
    %225 = arith.addf %224, %223 : vector<16x32xf32>
    %cst_98 = arith.constant 1.000000e+00 : f32
    %226 = vector.broadcast %cst_98 : f32 to vector<16x32xf32>
    %227 = arith.divf %226, %225 : vector<16x32xf32>
    %228 = arith.mulf %227, %219 : vector<16x32xf32>
    %cst_99 = arith.constant dense<0.000000e+00> : vector<8x32xf32>
    %229 = tpu.matmul %7, %228, %cst_99 {dimension_numbers = #tpu.dot_dimension_numbers<[1], [0], [0], [1], [0, 0, 1, 1], [], []>} : vector<8x16xf32>, vector<16x32xf32>, vector<8x32xf32> -> vector<8x32xf32>
    %230 = vector.extract_strided_slice %208 {offsets = [0, 96], sizes = [8, 32], strides = [1, 1]} : vector<8x128xf32> to vector<8x32xf32>
    %231 = arith.addf %229, %230 : vector<8x32xf32>
    %cst_100 = arith.constant dense<0.000000e+00> : vector<8xf32>
    %232 = vector.multi_reduction <add>, %231, %cst_100 [1] : vector<8x32xf32> to vector<8xf32>
    %233 = vector.shape_cast %232 : vector<8xf32> to vector<8x1xf32>
    %cst_101 = arith.constant 3.200000e+01 : f32
    %234 = vector.broadcast %cst_101 : f32 to vector<8x1xf32>
    %235 = arith.divf %233, %234 : vector<8x1xf32>
    %236 = vector.broadcast %235 : vector<8x1xf32> to vector<8x32xf32>
    %237 = arith.subf %231, %236 : vector<8x32xf32>
    %238 = arith.mulf %237, %237 : vector<8x32xf32>
    %cst_102 = arith.constant dense<0.000000e+00> : vector<8xf32>
    %239 = vector.multi_reduction <add>, %238, %cst_102 [1] : vector<8x32xf32> to vector<8xf32>
    %240 = vector.shape_cast %239 : vector<8xf32> to vector<8x1xf32>
    %cst_103 = arith.constant 3.200000e+01 : f32
    %241 = vector.broadcast %cst_103 : f32 to vector<8x1xf32>
    %242 = arith.divf %240, %241 : vector<8x1xf32>
    %243 = vector.broadcast %235 : vector<8x1xf32> to vector<8x32xf32>
    %244 = arith.subf %231, %243 : vector<8x32xf32>
    %cst_104 = arith.constant 9.99999974E-6 : f32
    %245 = vector.broadcast %cst_104 : f32 to vector<8x1xf32>
    %246 = arith.addf %242, %245 : vector<8x1xf32>
    %247 = math.rsqrt %246 : vector<8x1xf32>
    %248 = vector.broadcast %247 : vector<8x1xf32> to vector<8x32xf32>
    %249 = arith.mulf %244, %248 : vector<8x32xf32>
    %c2_105 = arith.constant 2 : index
    %c0_106 = arith.constant 0 : index
    %c0_107 = arith.constant 0 : index
    %250 = vector.load %arg8[%c2_105, %c0_106, %c0_107] : memref<3x2x32xf32, #tpu.memory_space<vmem>>, vector<1x2x32xf32>
    %251 = vector.shape_cast %250 : vector<1x2x32xf32> to vector<2x32xf32>
    %252 = vector.extract_strided_slice %251 {offsets = [0, 0], sizes = [1, 32], strides = [1, 1]} : vector<2x32xf32> to vector<1x32xf32>
    %253 = vector.broadcast %252 : vector<1x32xf32> to vector<8x32xf32>
    %254 = arith.mulf %249, %253 : vector<8x32xf32>
    %255 = vector.extract_strided_slice %251 {offsets = [1, 0], sizes = [1, 32], strides = [1, 1]} : vector<2x32xf32> to vector<1x32xf32>
    %256 = vector.broadcast %255 : vector<1x32xf32> to vector<8x32xf32>
    %257 = arith.addf %254, %256 : vector<8x32xf32>
    %cst_108 = arith.constant 5.000000e-01 : f32
    %258 = vector.broadcast %cst_108 : f32 to vector<8x32xf32>
    %259 = arith.mulf %258, %257 : vector<8x32xf32>
    %cst_109 = arith.constant 0.707106769 : f32
    %260 = vector.broadcast %cst_109 : f32 to vector<8x32xf32>
    %261 = arith.mulf %257, %260 : vector<8x32xf32>
    %cst_110 = arith.constant 0.000000e+00 : f32
    %262 = vector.broadcast %cst_110 : f32 to vector<8x32xf32>
    %263 = arith.cmpf oge, %261, %262 : vector<8x32xf32>
    %cst_111 = arith.constant 1.000000e+00 : f32
    %cst_112 = arith.constant -1.000000e+00 : f32
    %264 = vector.broadcast %cst_111 : f32 to vector<8x32xf32>
    %265 = vector.broadcast %cst_112 : f32 to vector<8x32xf32>
    %266 = arith.select %263, %264, %265 : vector<8x32xi1>, vector<8x32xf32>
    %267 = math.absf %261 : vector<8x32xf32>
    %cst_113 = arith.constant 0.327591091 : f32
    %268 = vector.broadcast %cst_113 : f32 to vector<8x32xf32>
    %269 = arith.mulf %268, %267 : vector<8x32xf32>
    %cst_114 = arith.constant 1.000000e+00 : f32
    %270 = vector.broadcast %cst_114 : f32 to vector<8x32xf32>
    %271 = arith.addf %270, %269 : vector<8x32xf32>
    %cst_115 = arith.constant 1.000000e+00 : f32
    %272 = vector.broadcast %cst_115 : f32 to vector<8x32xf32>
    %273 = arith.divf %272, %271 : vector<8x32xf32>
    %cst_116 = arith.constant 1.06140542 : f32
    %274 = vector.broadcast %cst_116 : f32 to vector<8x32xf32>
    %275 = arith.mulf %274, %273 : vector<8x32xf32>
    %cst_117 = arith.constant -1.45315206 : f32
    %276 = vector.broadcast %cst_117 : f32 to vector<8x32xf32>
    %277 = arith.addf %275, %276 : vector<8x32xf32>
    %278 = arith.mulf %277, %273 : vector<8x32xf32>
    %cst_118 = arith.constant 1.42141378 : f32
    %279 = vector.broadcast %cst_118 : f32 to vector<8x32xf32>
    %280 = arith.addf %278, %279 : vector<8x32xf32>
    %281 = arith.mulf %280, %273 : vector<8x32xf32>
    %cst_119 = arith.constant -0.284496725 : f32
    %282 = vector.broadcast %cst_119 : f32 to vector<8x32xf32>
    %283 = arith.addf %281, %282 : vector<8x32xf32>
    %284 = arith.mulf %283, %273 : vector<8x32xf32>
    %cst_120 = arith.constant 0.254829586 : f32
    %285 = vector.broadcast %cst_120 : f32 to vector<8x32xf32>
    %286 = arith.addf %284, %285 : vector<8x32xf32>
    %287 = arith.mulf %286, %273 : vector<8x32xf32>
    %cst_121 = arith.constant 0.000000e+00 : f32
    %288 = vector.broadcast %cst_121 : f32 to vector<8x32xf32>
    %289 = arith.subf %288, %267 : vector<8x32xf32>
    %290 = arith.mulf %289, %267 : vector<8x32xf32>
    %291 = math.exp %290 : vector<8x32xf32>
    %292 = arith.mulf %287, %291 : vector<8x32xf32>
    %cst_122 = arith.constant 1.000000e+00 : f32
    %293 = vector.broadcast %cst_122 : f32 to vector<8x32xf32>
    %294 = arith.subf %293, %292 : vector<8x32xf32>
    %295 = arith.mulf %266, %294 : vector<8x32xf32>
    %cst_123 = arith.constant 1.000000e+00 : f32
    %296 = vector.broadcast %cst_123 : f32 to vector<8x32xf32>
    %297 = arith.addf %296, %295 : vector<8x32xf32>
    %298 = arith.mulf %259, %297 : vector<8x32xf32>
    %c0_124 = arith.constant 0 : index
    %c0_125 = arith.constant 0 : index
    %299 = vector.load %arg9[%c0_124, %c0_125] : memref<32x128xf32, #tpu.memory_space<vmem>>, vector<32x128xf32>
    %cst_126 = arith.constant dense<0.000000e+00> : vector<8x128xf32>
    %300 = tpu.matmul %298, %299, %cst_126 {dimension_numbers = #tpu.dot_dimension_numbers<[1], [0], [0], [1], [0, 0, 1, 1], [], []>} : vector<8x32xf32>, vector<32x128xf32>, vector<8x128xf32> -> vector<8x128xf32>
    %c0_127 = arith.constant 0 : index
    %c0_128 = arith.constant 0 : index
    %301 = vector.load %arg10[%c0_127, %c0_128] : memref<8x128xf32, #tpu.memory_space<vmem>>, vector<8x128xf32>
    tpu.vector_store %arg10[%c0_127, %c0_128], %300 {strides = array<i32>} : memref<8x128xf32, #tpu.memory_space<vmem>>, vector<8x128xf32>,
    return
  }
}

</mosaic_0001>

<llo_original>
// kernel: joiner_forward.1
$region0: #{joiner_forward.1}
  #allocation0 [shape = 'u32[]', space=smem, size = 0x4, offset = 0x4, fixed_abs, tag = 'smem constant byte address 0x4 - core index']
  #allocation1 [shape = 'u32[144,128]{1,0:T(1,128)}', space=vmem, size = 0x12000, scoped, tag = 'internal scratch']
  %s0 = inlined_call_operand.vmem [shape: f32[8,16], index: 0, kind: input, shape index: {}]
  %s1 = inlined_call_operand.vmem [shape: f32[3,16,32], index: 1, kind: input, shape index: {}]
  %s2 = inlined_call_operand.vmem [shape: f32[32,8], index: 2, kind: input, shape index: {}]
  %s3 = inlined_call_operand.vmem [shape: f32[8,16], index: 3, kind: input, shape index: {}]
  %s4 = inlined_call_operand.vmem [shape: f32[16,32], index: 4, kind: input, shape index: {}]
  %s5 = inlined_call_operand.vmem [shape: f32[1,32], index: 5, kind: input, shape index: {}]
  %s6 = inlined_call_operand.vmem [shape: f32[3,32,128], index: 6, kind: input, shape index: {}]
  %s7 = inlined_call_operand.vmem [shape: f32[3,1,128], index: 7, kind: input, shape index: {}]
  %s8 = inlined_call_operand.vmem [shape: f32[3,2,32], index: 8, kind: input, shape index: {}]
  %s9 = inlined_call_operand.vmem [shape: f32[32,128], index: 9, kind: input, shape index: {}]
  %s10 = inlined_call_operand.hbm [shape: f32[8,128], index: 10, kind: output, shape index: {}]
  %s11 = sld [smem:[#allocation0]]
  $region50: #{joiner_forward.1} parent=0
    _
  %s13 = ssub.s32 1, %s11
  %s14 = scalar_select 0, %s13, %s11
  $region1: #{joiner_forward.1} parent=0
    #allocation2 [shape = 'u8[4096]{0}', space=vmem, size = 0x1000, scoped, tag = 'output window, operand 0, single buffered']
    #allocation3 [shape = 's32[1]{0}', space=sflag, size = 0x4, scoped, tag = 'scoped memory for joiner_forward.1']
    %15 = vsyncpa [#allocation3], 0
    // Predicated region
    $region2: #{joiner_forward.1} parent=1 // pred_check
      _
    $region3: #{joiner_forward.1} parent=1 // pred_check_branch
      %17 = sbr.rel (0) target = $region5
    $region4: #{joiner_forward.1} parent=1 // pred_region
      _
    $region5: #{joiner_forward.1} parent=1 // pred_fallthru
      _
    // Predicated region
    $region6: #{joiner_forward.1} parent=1 // pred_check
      _
    $region7: #{joiner_forward.1} parent=1 // pred_check_branch
      %19 = sbr.rel (0) target = $region9
    $region8: #{joiner_forward.1} parent=1 // pred_region
      _
    $region9: #{joiner_forward.1} parent=1 // pred_fallthru
      _
    // Predicated region
    $region10: #{joiner_forward.1} parent=1 // pred_check
      _
    $region11: #{joiner_forward.1} parent=1 // pred_check_branch
      %21 = sbr.rel (0) target = $region13
    $region12: #{joiner_forward.1} parent=1 // pred_region
      _
    $region13: #{joiner_forward.1} parent=1 // pred_fallthru
      _
    // Predicated region
    $region14: #{joiner_forward.1} parent=1 // pred_check
      _
    $region15: #{joiner_forward.1} parent=1 // pred_check_branch
      %23 = sbr.rel (0) target = $region17
    $region16: #{joiner_forward.1} parent=1 // pred_region
      _
    $region17: #{joiner_forward.1} parent=1 // pred_fallthru
      _
    // Predicated region
    $region18: #{joiner_forward.1} parent=1 // pred_check
      _
    $region19: #{joiner_forward.1} parent=1 // pred_check_branch
      %25 = sbr.rel (0) target = $region21
    $region20: #{joiner_forward.1} parent=1 // pred_region
      _
    $region21: #{joiner_forward.1} parent=1 // pred_fallthru
      _
    // Predicated region
    $region22: #{joiner_forward.1} parent=1 // pred_check
      _
    $region23: #{joiner_forward.1} parent=1 // pred_check_branch
      %27 = sbr.rel (0) target = $region25
    $region24: #{joiner_forward.1} parent=1 // pred_region
      _
    $region25: #{joiner_forward.1} parent=1 // pred_fallthru
      _
    // Predicated region
    $region26: #{joiner_forward.1} parent=1 // pred_check
      _
    $region27: #{joiner_forward.1} parent=1 // pred_check_branch
      %29 = sbr.rel (0) target = $region29
    $region28: #{joiner_forward.1} parent=1 // pred_region
      _
    $region29: #{joiner_forward.1} parent=1 // pred_fallthru
      _
    // Predicated region
    $region30: #{joiner_forward.1} parent=1 // pred_check
      _
    $region31: #{joiner_forward.1} parent=1 // pred_check_branch
      %31 = sbr.rel (0) target = $region33
    $region32: #{joiner_forward.1} parent=1 // pred_region
      _
    $region33: #{joiner_forward.1} parent=1 // pred_fallthru
      _
    // Predicated region
    $region34: #{joiner_forward.1} parent=1 // pred_check
      _
    $region35: #{joiner_forward.1} parent=1 // pred_check_branch
      %33 = sbr.rel (0) target = $region37
    $region36: #{joiner_forward.1} parent=1 // pred_region
      _
    $region37: #{joiner_forward.1} parent=1 // pred_fallthru
      _
    // Predicated region
    $region38: #{joiner_forward.1} parent=1 // pred_check
      _
    $region39: #{joiner_forward.1} parent=1 // pred_check_branch
      %35 = sbr.rel (0) target = $region41
    $region40: #{joiner_forward.1} parent=1 // pred_region
      _
    $region41: #{joiner_forward.1} parent=1 // pred_fallthru
      _
    %v36 = vld [vmem:[%s0] sm:$0xff]
    %v37 = vld [vmem:[%s4] sm:$0xff]
    %v38 = vld [vmem:[%s4 + $0x8] sm:$0xff]
    %v39 = vld [vmem:[%s5] sm:$0x1]
    %v41 = vlaneseq
    %v42 = vshrl.u32 %v41, 7
    %v43 = vsub.s32 0, %v42
    %v44 = vrot.slane %v39, %v43
    %vm46 = vcmask 130048
    %v48 = vsel %vm46, %v36, 0
    %50 = vmatprep.subr.mxu0 0.0
    %51 = vmatpush1.msra.mxu0 %v37
    %52 = vmatprep.subr.mxu0 0.0
    %53 = vmatpush1.msra.mxu0 %v38
    %54 = vmatprep.subr.mxu0 0.0
    %55 = vmatpush1.msra.mxu0 0.0
    %56 = vmatprep.subr.mxu0 0.0
    %57 = vmatpush1.msra.mxu0 0.0
    %58 = vmatprep.subr.mxu0 0.0
    %59 = vmatpush1.msra.mxu0 0.0
    %60 = vmatprep.subr.mxu0 0.0
    %61 = vmatpush1.msra.mxu0 0.0
    %62 = vmatprep.subr.mxu0 0.0
    %63 = vmatpush1.msra.mxu0 0.0
    %64 = vmatprep.subr.mxu0 0.0
    %65 = vmatpush1.msra.mxu0 0.0
    %66 = vmatprep.subr.mxu0 0.0
    %67 = vmatpush1.msra.mxu0 0.0
    %68 = vmatprep.subr.mxu0 0.0
    %69 = vmatpush1.msra.mxu0 0.0
    %70 = vmatprep.subr.mxu0 0.0
    %71 = vmatpush1.msra.mxu0 0.0
    %72 = vmatprep.subr.mxu0 0.0
    %73 = vmatpush1.msra.mxu0 0.0
    %74 = vmatprep.subr.mxu0 0.0
    %75 = vmatpush1.msra.mxu0 0.0
    %76 = vmatprep.subr.mxu0 0.0
    %77 = vmatpush1.msra.mxu0 0.0
    %78 = vmatprep.subr.mxu0 0.0
    %79 = vmatpush1.msra.mxu0 0.0
    %80 = vmatprep.subr.mxu0 0.0
    %81 = vmatpush1.msra.mxu0 0.0
    %82 = vmatprep.subr.mxu0 0.0
    %83 = vmatpush1.msra.mxu0 0.0
    %84 = vmatprep.subr.mxu0 0.0
    %85 = vmatpush1.msra.mxu0 0.0
    %86 = vmatprep.subr.mxu0 0.0
    %87 = vmatpush1.msra.mxu0 0.0
    %88 = vmatprep.subr.mxu0 0.0
    %89 = vmatpush1.msra.mxu0 0.0
    %90 = vmatprep.subr.mxu0 0.0
    %91 = vmatpush1.msra.mxu0 0.0
    %92 = vmatprep.subr.mxu0 0.0
    %93 = vmatpush1.msra.mxu0 0.0
    %94 = vmatprep.subr.mxu0 0.0
    %95 = vmatpush1.msra.mxu0 0.0
    %96 = vmatprep.subr.mxu0 0.0
    %97 = vmatpush1.msra.mxu0 0.0
    %98 = vmatprep.subr.mxu0 0.0
    %99 = vmatpush1.msra.mxu0 0.0
    %100 = vmatprep.subr.mxu0 0.0
    %101 = vmatpush1.msra.mxu0 0.0
    %102 = vmatprep.subr.mxu0 0.0
    %103 = vmatpush1.msra.mxu0 0.0
    %104 = vmatprep.subr.mxu0 0.0
    %105 = vmatpush1.msra.mxu0 0.0
    %106 = vmatprep.subr.mxu0 0.0
    %107 = vmatpush1.msra.mxu0 0.0
    %108 = vmatprep.subr.mxu0 0.0
    %109 = vmatpush1.msra.mxu0 0.0
    %110 = vmatprep.subr.mxu0 0.0
    %111 = vmatpush1.msra.mxu0 0.0
    %112 = vmatprep.subr.mxu0 0.0
    %113 = vmatpush1.msra.mxu0 0.0
    %114 = vmatprep.mubr.f32.mxu0 0.0
    %115 = vmatmul.mubr.f32.gmra.mrb[0].mxu0 %v48
    %v116 = vpop.f32.mrb[0].mxu0
    %v117 = vadd.f32 %v44, %v116
    %v118 = vpop.f32.mrb[0].mxu0
    %119 = vdwg.mxu0
    %v120 = vld [vmem:[%s2] sm:$0xff]
    %v121 = vld [vmem:[%s2 + $0x8] sm:$0xff]
    %v122 = vld [vmem:[%s2 + $0x10] sm:$0xff]
    %v123 = vld [vmem:[%s2 + $0x18] sm:$0xff]
    %v124 = vld [vmem:[%s3] sm:$0xff]
    %v125 = vld [vmem:[%s6] sm:$0xff]
    %v126 = vld [vmem:[%s6 + $0x8] sm:$0xff]
    %v127 = vld [vmem:[%s6 + $0x10] sm:$0xff]
    %v128 = vld [vmem:[%s6 + $0x18] sm:$0xff]
    %v129 = vld [vmem:[%s7] sm:$0x1]
    %v131 = vlaneseq
    %v132 = vshrl.u32 %v131, 7
    %v133 = vsub.s32 0, %v132
    %v134 = vrot.slane %v129, %v133
    %vm136 = vcmask 261120
    %v138 = vsel %vm136, %v117, 0
    %140 = vmatprep.subr.mxu0 0.0
    %141 = vmatpush1.msra.mxu0 %v125
    %142 = vmatprep.subr.mxu0 0.0
    %143 = vmatpush1.msra.mxu0 %v126
    %144 = vmatprep.subr.mxu0 0.0
    %145 = vmatpush1.msra.mxu0 %v127
    %146 = vmatprep.subr.mxu0 0.0
    %147 = vmatpush1.msra.mxu0 %v128
    %148 = vmatprep.subr.mxu0 0.0
    %149 = vmatpush1.msra.mxu0 0.0
    %150 = vmatprep.subr.mxu0 0.0
    %151 = vmatpush1.msra.mxu0 0.0
    %152 = vmatprep.subr.mxu0 0.0
    %153 = vmatpush1.msra.mxu0 0.0
    %154 = vmatprep.subr.mxu0 0.0
    %155 = vmatpush1.msra.mxu0 0.0
    %156 = vmatprep.subr.mxu0 0.0
    %157 = vmatpush1.msra.mxu0 0.0
    %158 = vmatprep.subr.mxu0 0.0
    %159 = vmatpush1.msra.mxu0 0.0
    %160 = vmatprep.subr.mxu0 0.0
    %161 = vmatpush1.msra.mxu0 0.0
    %162 = vmatprep.subr.mxu0 0.0
    %163 = vmatpush1.msra.mxu0 0.0
    %164 = vmatprep.subr.mxu0 0.0
    %165 = vmatpush1.msra.mxu0 0.0
    %166 = vmatprep.subr.mxu0 0.0
    %167 = vmatpush1.msra.mxu0 0.0
    %168 = vmatprep.subr.mxu0 0.0
    %169 = vmatpush1.msra.mxu0 0.0
    %170 = vmatprep.subr.mxu0 0.0
    %171 = vmatpush1.msra.mxu0 0.0
    %172 = vmatprep.subr.mxu0 0.0
    %173 = vmatpush1.msra.mxu0 0.0
    %174 = vmatprep.subr.mxu0 0.0
    %175 = vmatpush1.msra.mxu0 0.0
    %176 = vmatprep.subr.mxu0 0.0
    %177 = vmatpush1.msra.mxu0 0.0
    %178 = vmatprep.subr.mxu0 0.0
    %179 = vmatpush1.msra.mxu0 0.0
    %180 = vmatprep.subr.mxu0 0.0
    %181 = vmatpush1.msra.mxu0 0.0
    %182 = vmatprep.subr.mxu0 0.0
    %183 = vmatpush1.msra.mxu0 0.0
    %184 = vmatprep.subr.mxu0 0.0
    %185 = vmatpush1.msra.mxu0 0.0
    %186 = vmatprep.subr.mxu0 0.0
    %187 = vmatpush1.msra.mxu0 0.0
    %188 = vmatprep.subr.mxu0 0.0
    %189 = vmatpush1.msra.mxu0 0.0
    %190 = vmatprep.subr.mxu0 0.0
    %191 = vmatpush1.msra.mxu0 0.0
    %192 = vmatprep.subr.mxu0 0.0
    %193 = vmatpush1.msra.mxu0 0.0
    %194 = vmatprep.subr.mxu0 0.0
    %195 = vmatpush1.msra.mxu0 0.0
    %196 = vmatprep.subr.mxu0 0.0
    %197 = vmatpush1.msra.mxu0 0.0
    %198 = vmatprep.subr.mxu0 0.0
    %199 = vmatpush1.msra.mxu0 0.0
    %200 = vmatprep.subr.mxu0 0.0
    %201 = vmatpush1.msra.mxu0 0.0
    %202 = vmatprep.subr.mxu0 0.0
    %203 = vmatpush1.msra.mxu0 0.0
    %204 = vmatprep.mubr.f32.mxu0 0.0
    %205 = vmatmul.mubr.f32.gmra.mrb[0].mxu0 %v138
    %v206 = vpop.f32.mrb[0].mxu0
    %v207 = vadd.f32 %v134, %v206
    %v208 = vpop.f32.mrb[0].mxu0
    %209 = vdwg.mxu0
    %vm210 = vcmask 64512
    %v212 = vsel %vm210, %v120, 0
    %v215 = vsel %vm210, %v121, 0
    %v218 = vsel %vm210, %v122, 0
    %v221 = vsel %vm210, %v123, 0
    %223 = vmatprep.subr.mxu0 0.0
    %224 = vmatpush1.msra.mxu0 %v207
    %225 = vmatprep.subr.mxu0 0.0
    %226 = vmatpush1.msra.mxu0 0.0
    %227 = vmatprep.subr.mxu0 0.0
    %228 = vmatpush1.msra.mxu0 0.0
    %229 = vmatprep.subr.mxu0 0.0
    %230 = vmatpush1.msra.mxu0 0.0
    %231 = vmatprep.subr.mxu0 0.0
    %232 = vmatpush1.msra.mxu0 0.0
    %233 = vmatprep.subr.mxu0 0.0
    %234 = vmatpush1.msra.mxu0 0.0
    %235 = vmatprep.subr.mxu0 0.0
    %236 = vmatpush1.msra.mxu0 0.0
    %237 = vmatprep.subr.mxu0 0.0
    %238 = vmatpush1.msra.mxu0 0.0
    %239 = vmatprep.subr.mxu0 0.0
    %240 = vmatpush1.msra.mxu0 0.0
    %241 = vmatprep.subr.mxu0 0.0
    %242 = vmatpush1.msra.mxu0 0.0
    %243 = vmatprep.subr.mxu0 0.0
    %244 = vmatpush1.msra.mxu0 0.0
    %245 = vmatprep.subr.mxu0 0.0
    %246 = vmatpush1.msra.mxu0 0.0
    %247 = vmatprep.subr.mxu0 0.0
    %248 = vmatpush1.msra.mxu0 0.0
    %249 = vmatprep.subr.mxu0 0.0
    %250 = vmatpush1.msra.mxu0 0.0
    %251 = vmatprep.subr.mxu0 0.0
    %252 = vmatpush1.msra.mxu0 0.0
    %253 = vmatprep.subr.mxu0 0.0
    %254 = vmatpush1.msra.mxu0 0.0
    %255 = vmatprep.subr.mxu0 0.0
    %256 = vmatpush1.msra.mxu0 0.0
    %257 = vmatprep.subr.mxu0 0.0
    %258 = vmatpush1.msra.mxu0 0.0
    %259 = vmatprep.subr.mxu0 0.0
    %260 = vmatpush1.msra.mxu0 0.0
    %261 = vmatprep.subr.mxu0 0.0
    %262 = vmatpush1.msra.mxu0 0.0
    %263 = vmatprep.subr.mxu0 0.0
    %264 = vmatpush1.msra.mxu0 0.0
    %265 = vmatprep.subr.mxu0 0.0
    %266 = vmatpush1.msra.mxu0 0.0
    %267 = vmatprep.subr.mxu0 0.0
    %268 = vmatpush1.msra.mxu0 0.0
    %269 = vmatprep.subr.mxu0 0.0
    %270 = vmatpush1.msra.mxu0 0.0
    %271 = vmatprep.subr.mxu0 0.0
    %272 = vmatpush1.msra.mxu0 0.0
    %273 = vmatprep.subr.mxu0 0.0
    %274 = vmatpush1.msra.mxu0 0.0
    %275 = vmatprep.subr.mxu0 0.0
    %276 = vmatpush1.msra.mxu0 0.0
    %277 = vmatprep.subr.mxu0 0.0
    %278 = vmatpush1.msra.mxu0 0.0
    %279 = vmatprep.subr.mxu0 0.0
    %280 = vmatpush1.msra.mxu0 0.0
    %281 = vmatprep.subr.mxu0 0.0
    %282 = vmatpush1.msra.mxu0 0.0
    %283 = vmatprep.subr.mxu0 0.0
    %284 = vmatpush1.msra.mxu0 0.0
    %285 = vmatprep.subr.mxu0 0.0
    %286 = vmatpush1.msra.mxu0 0.0
    %287 = vmatprep.mubr.f32.mxu0 0.0
    %288 = vmatmul.mubr.f32.gmra.mrb[0].mxu0 %v212
    %v289 = vpop.f32.mrb[0].mxu0
    %v290 = vadd.f32 0.0, %v289
    %v291 = vpop.f32.mrb[0].mxu0
    %292 = vmatprep.mubr.f32.mxu0 0.0
    %293 = vmatmul.mubr.f32.gmra.mrb[0].mxu0 %v215
    %v294 = vpop.f32.mrb[0].mxu0
    %v295 = vadd.f32 0.0, %v294
    %v296 = vpop.f32.mrb[0].mxu0
    %297 = vmatprep.mubr.f32.mxu0 0.0
    %298 = vmatmul.mubr.f32.gmra.mrb[0].mxu0 %v218
    %v299 = vpop.f32.mrb[0].mxu0
    %v300 = vadd.f32 0.0, %v299
    %v301 = vpop.f32.mrb[0].mxu0
    %302 = vmatprep.mubr.f32.mxu0 0.0
    %303 = vmatmul.mubr.f32.gmra.mrb[0].mxu0 %v221
    %v304 = vpop.f32.mrb[0].mxu0
    %v305 = vadd.f32 0.0, %v304
    %v306 = vpop.f32.mrb[0].mxu0
    %307 = vdwg.mxu0
    %v308 = vld [vmem:[%s1] sm:$0xff]
    %v309 = vld [vmem:[%s1 + $0x8] sm:$0xff]
    %v310 = vadd.f32 %v290, %v308
    %v311 = vadd.f32 %v295, %v309
    %314 = vrot.lane.b32.xlu0 %v308, 32
    %v315 = vpop.permute.xlu0 %314
    %316 = vrot.lane.b32.xlu0 %v309, 32
    %v317 = vpop.permute.xlu0 %316
    %v320 = vadd.f32 %v300, %v315
    %v321 = vadd.f32 %v305, %v317
    %322 = vrot.lane.b32.xlu0 %v308, 64
    %v323 = vpop.permute.xlu0 %322
    %324 = vrot.lane.b32.xlu0 %v309, 64
    %v325 = vpop.permute.xlu0 %324
    %v328 = vadd.f32 %v300, %v323
    %v329 = vadd.f32 %v305, %v325
    %332 = vrot.lane.b32.xlu0 %v320, 96
    %v333 = vpop.permute.xlu0 %332
    %334 = vrot.lane.b32.xlu0 %v321, 96
    %v335 = vpop.permute.xlu0 %334
    %v338 = vadd.f32 %v310, %v333
    %v339 = vadd.f32 %v311, %v335
    %v340 = vsub.f32 0.0, %v338
    %v341 = vsub.f32 0.0, %v339
    %v342 = vmul.f32 %v340, 1.442695
    %v343 = vpow.pop %v342
    %v344 = vmul.f32 %v341, 1.442695
    %v345 = vpow.pop %v344
    %v346 = vadd.f32 %v343, 1.0
    %v347 = vadd.f32 %v345, 1.0
    %v348 = vrcp.pop %v346
    %v349 = vmul.f32 1.0, %v348
    %v350 = vrcp.pop %v347
    %v351 = vmul.f32 1.0, %v350
    %354 = vrot.lane.b32.xlu0 %v328, 64
    %v355 = vpop.permute.xlu0 %354
    %356 = vrot.lane.b32.xlu0 %v329, 64
    %v357 = vpop.permute.xlu0 %356
    %v360 = vmul.f32 %v349, %v355
    %v361 = vmul.f32 %v351, %v357
    %363 = vrot.lane.b32.xlu0 %v207, 32
    %v364 = vpop.permute.xlu0 %363
    %v367 = vsel %vm46, %v124, 0
    %369 = vmatprep.subr.mxu0 0.0
    %370 = vmatpush1.msra.mxu0 %v360
    %371 = vmatprep.subr.mxu0 0.0
    %372 = vmatpush1.msra.mxu0 %v361
    %373 = vmatprep.subr.mxu0 0.0
    %374 = vmatpush1.msra.mxu0 0.0
    %375 = vmatprep.subr.mxu0 0.0
    %376 = vmatpush1.msra.mxu0 0.0
    %377 = vmatprep.subr.mxu0 0.0
    %378 = vmatpush1.msra.mxu0 0.0
    %379 = vmatprep.subr.mxu0 0.0
    %380 = vmatpush1.msra.mxu0 0.0
    %381 = vmatprep.subr.mxu0 0.0
    %382 = vmatpush1.msra.mxu0 0.0
    %383 = vmatprep.subr.mxu0 0.0
    %384 = vmatpush1.msra.mxu0 0.0
    %385 = vmatprep.subr.mxu0 0.0
    %386 = vmatpush1.msra.mxu0 0.0
    %387 = vmatprep.subr.mxu0 0.0
    %388 = vmatpush1.msra.mxu0 0.0
    %389 = vmatprep.subr.mxu0 0.0
    %390 = vmatpush1.msra.mxu0 0.0
    %391 = vmatprep.subr.mxu0 0.0
    %392 = vmatpush1.msra.mxu0 0.0
    %393 = vmatprep.subr.mxu0 0.0
    %394 = vmatpush1.msra.mxu0 0.0
    %395 = vmatprep.subr.mxu0 0.0
    %396 = vmatpush1.msra.mxu0 0.0
    %397 = vmatprep.subr.mxu0 0.0
    %398 = vmatpush1.msra.mxu0 0.0
    %399 = vmatprep.subr.mxu0 0.0
    %400 = vmatpush1.msra.mxu0 0.0
    %401 = vmatprep.subr.mxu0 0.0
    %402 = vmatpush1.msra.mxu0 0.0
    %403 = vmatprep.subr.mxu0 0.0
    %404 = vmatpush1.msra.mxu0 0.0
    %405 = vmatprep.subr.mxu0 0.0
    %406 = vmatpush1.msra.mxu0 0.0
    %407 = vmatprep.subr.mxu0 0.0
    %408 = vmatpush1.msra.mxu0 0.0
    %409 = vmatprep.subr.mxu0 0.0
    %410 = vmatpush1.msra.mxu0 0.0
    %411 = vmatprep.subr.mxu0 0.0
    %412 = vmatpush1.msra.mxu0 0.0
    %413 = vmatprep.subr.mxu0 0.0
    %414 = vmatpush1.msra.mxu0 0.0
    %415 = vmatprep.subr.mxu0 0.0
    %416 = vmatpush1.msra.mxu0 0.0
    %417 = vmatprep.subr.mxu0 0.0
    %418 = vmatpush1.msra.mxu0 0.0
    %419 = vmatprep.subr.mxu0 0.0
    %420 = vmatpush1.msra.mxu0 0.0
    %421 = vmatprep.subr.mxu0 0.0
    %422 = vmatpush1.msra.mxu0 0.0
    %423 = vmatprep.subr.mxu0 0.0
    %424 = vmatpush1.msra.mxu0 0.0
    %425 = vmatprep.subr.mxu0 0.0
    %426 = vmatpush1.msra.mxu0 0.0
    %427 = vmatprep.subr.mxu0 0.0
    %428 = vmatpush1.msra.mxu0 0.0
    %429 = vmatprep.subr.mxu0 0.0
    %430 = vmatpush1.msra.mxu0 0.0
    %431 = vmatprep.subr.mxu0 0.0
    %432 = vmatpush1.msra.mxu0 0.0
    %433 = vmatprep.mubr.f32.mxu0 0.0
    %434 = vmatmul.mubr.f32.gmra.mrb[0].mxu0 %v367
    %v435 = vpop.f32.mrb[0].mxu0
    %v436 = vadd.f32 %v364, %v435
    %v437 = vpop.f32.mrb[0].mxu0
    %438 = vdwg.mxu0
    %v439 = vsel %vm136, %v436, 0.0
    %440 = vadd.xlane.f32.xlu0 %v439
    %v441 = vpop.xlane.xlu0 %440
    %v442 = vrcp.pop 32.0
    %v443 = vmul.f32 %v441, %v442
    %v444 = vsub.f32 %v436, %v443
    %v445 = vmul.f32 %v444, %v444
    %v446 = vsel %vm136, %v445, 0.0
    %447 = vadd.xlane.f32.xlu0 %v446
    %v448 = vpop.xlane.xlu0 %447
    %v449 = vmul.f32 %v448, %v442
    %v450 = vadd.f32 %v449, 1e-05
    %v451 = vrsqrt.pop %v450
    %v452 = vmul.f32 %v444, %v451
    %v453 = vld [vmem:[%s8] sm:$0x3]
    %v454 = vlaneseq
    %v455 = vshrl.u32 %v454, 7
    %v456 = vsub.s32 0, %v455
    %v457 = vrot.slane %v453, %v456
    %v458 = vmul.f32 %v452, %v457
    %v459 = vlaneseq
    %v460 = vshrl.u32 %v459, 7
    %v461 = vsub.s32 1, %v460
    %v462 = vrot.slane %v453, %v461
    %v463 = vadd.f32 %v458, %v462
    %v464 = vmul.f32 %v463, 0.5
    %v465 = vmul.f32 %v463, 0.70710677
    %vm466 = vcmp.ge.f32.partialorder %v465, 0.0
    %v467 = vsel %vm466, 1.0, -1.0
    %v468 = vand.u32 2147483647, %v465
    %v469 = vmul.f32 %v468, 0.3275911
    %v470 = vadd.f32 %v469, 1.0
    %v471 = vrcp.pop %v470
    %v472 = vmul.f32 1.0, %v471
    %v473 = vmul.f32 %v472, 1.0614054
    %v474 = vadd.f32 %v473, -1.4531521
    %v475 = vmul.f32 %v474, %v472
    %v476 = vadd.f32 %v475, 1.4214138
    %v477 = vmul.f32 %v476, %v472
    %v478 = vadd.f32 %v477, -0.28449672
    %v479 = vmul.f32 %v478, %v472
    %v480 = vadd.f32 %v479, 0.2548296
    %v481 = vmul.f32 %v480, %v472
    %v482 = vsub.f32 0.0, %v468
    %v483 = vmul.f32 %v482, %v468
    %v484 = vmul.f32 %v483, 1.442695
    %v485 = vpow.pop %v484
    %v486 = vmul.f32 %v481, %v485
    %v487 = vsub.f32 1.0, %v486
    %v488 = vmul.f32 %v467, %v487
    %v489 = vadd.f32 %v488, 1.0
    %v490 = vmul.f32 %v464, %v489
    %s491 = scalar_lea.vmem %s6, 32
    %v492 = vld [vmem:[%s491] sm:$0xff]
    %v493 = vld [vmem:[%s491 + $0x8] sm:$0xff]
    %v494 = vld [vmem:[%s491 + $0x10] sm:$0xff]
    %v495 = vld [vmem:[%s491 + $0x18] sm:$0xff]
    %s496 = scalar_lea.vmem %s7, 1
    %v497 = vld [vmem:[%s496] sm:$0x1]
    %v499 = vlaneseq
    %v500 = vshrl.u32 %v499, 7
    %v501 = vsub.s32 0, %v500
    %v502 = vrot.slane %v497, %v501
    %v505 = vsel %vm136, %v490, 0
    %507 = vmatprep.subr.mxu0 0.0
    %508 = vmatpush1.msra.mxu0 %v492
    %509 = vmatprep.subr.mxu0 0.0
    %510 = vmatpush1.msra.mxu0 %v493
    %511 = vmatprep.subr.mxu0 0.0
    %512 = vmatpush1.msra.mxu0 %v494
    %513 = vmatprep.subr.mxu0 0.0
    %514 = vmatpush1.msra.mxu0 %v495
    %515 = vmatprep.subr.mxu0 0.0
    %516 = vmatpush1.msra.mxu0 0.0
    %517 = vmatprep.subr.mxu0 0.0
    %518 = vmatpush1.msra.mxu0 0.0
    %519 = vmatprep.subr.mxu0 0.0
    %520 = vmatpush1.msra.mxu0 0.0
    %521 = vmatprep.subr.mxu0 0.0
    %522 = vmatpush1.msra.mxu0 0.0
    %523 = vmatprep.subr.mxu0 0.0
    %524 = vmatpush1.msra.mxu0 0.0
    %525 = vmatprep.subr.mxu0 0.0
    %526 = vmatpush1.msra.mxu0 0.0
    %527 = vmatprep.subr.mxu0 0.0
    %528 = vmatpush1.msra.mxu0 0.0
    %529 = vmatprep.subr.mxu0 0.0
    %530 = vmatpush1.msra.mxu0 0.0
    %531 = vmatprep.subr.mxu0 0.0
    %532 = vmatpush1.msra.mxu0 0.0
    %533 = vmatprep.subr.mxu0 0.0
    %534 = vmatpush1.msra.mxu0 0.0
    %535 = vmatprep.subr.mxu0 0.0
    %536 = vmatpush1.msra.mxu0 0.0
    %537 = vmatprep.subr.mxu0 0.0
    %538 = vmatpush1.msra.mxu0 0.0
    %539 = vmatprep.subr.mxu0 0.0
    %540 = vmatpush1.msra.mxu0 0.0
    %541 = vmatprep.subr.mxu0 0.0
    %542 = vmatpush1.msra.mxu0 0.0
    %543 = vmatprep.subr.mxu0 0.0
    %544 = vmatpush1.msra.mxu0 0.0
    %545 = vmatprep.subr.mxu0 0.0
    %546 = vmatpush1.msra.mxu0 0.0
    %547 = vmatprep.subr.mxu0 0.0
    %548 = vmatpush1.msra.mxu0 0.0
    %549 = vmatprep.subr.mxu0 0.0
    %550 = vmatpush1.msra.mxu0 0.0
    %551 = vmatprep.subr.mxu0 0.0
    %552 = vmatpush1.msra.mxu0 0.0
    %553 = vmatprep.subr.mxu0 0.0
    %554 = vmatpush1.msra.mxu0 0.0
    %555 = vmatprep.subr.mxu0 0.0
    %556 = vmatpush1.msra.mxu0 0.0
    %557 = vmatprep.subr.mxu0 0.0
    %558 = vmatpush1.msra.mxu0 0.0
    %559 = vmatprep.subr.mxu0 0.0
    %560 = vmatpush1.msra.mxu0 0.0
    %561 = vmatprep.subr.mxu0 0.0
    %562 = vmatpush1.msra.mxu0 0.0
    %563 = vmatprep.subr.mxu0 0.0
    %564 = vmatpush1.msra.mxu0 0.0
    %565 = vmatprep.subr.mxu0 0.0
    %566 = vmatpush1.msra.mxu0 0.0
    %567 = vmatprep.subr.mxu0 0.0
    %568 = vmatpush1.msra.mxu0 0.0
    %569 = vmatprep.subr.mxu0 0.0
    %570 = vmatpush1.msra.mxu0 0.0
    %571 = vmatprep.mubr.f32.mxu0 0.0
    %572 = vmatmul.mubr.f32.gmra.mrb[0].mxu0 %v505
    %v573 = vpop.f32.mrb[0].mxu0
    %v574 = vadd.f32 %v502, %v573
    %v575 = vpop.f32.mrb[0].mxu0
    %576 = vdwg.mxu0
    %577 = vmatprep.subr.mxu0 0.0
    %578 = vmatpush1.msra.mxu0 %v574
    %579 = vmatprep.subr.mxu0 0.0
    %580 = vmatpush1.msra.mxu0 0.0
    %581 = vmatprep.subr.mxu0 0.0
    %582 = vmatpush1.msra.mxu0 0.0
    %583 = vmatprep.subr.mxu0 0.0
    %584 = vmatpush1.msra.mxu0 0.0
    %585 = vmatprep.subr.mxu0 0.0
    %586 = vmatpush1.msra.mxu0 0.0
    %587 = vmatprep.subr.mxu0 0.0
    %588 = vmatpush1.msra.mxu0 0.0
    %589 = vmatprep.subr.mxu0 0.0
    %590 = vmatpush1.msra.mxu0 0.0
    %591 = vmatprep.subr.mxu0 0.0
    %592 = vmatpush1.msra.mxu0 0.0
    %593 = vmatprep.subr.mxu0 0.0
    %594 = vmatpush1.msra.mxu0 0.0
    %595 = vmatprep.subr.mxu0 0.0
    %596 = vmatpush1.msra.mxu0 0.0
    %597 = vmatprep.subr.mxu0 0.0
    %598 = vmatpush1.msra.mxu0 0.0
    %599 = vmatprep.subr.mxu0 0.0
    %600 = vmatpush1.msra.mxu0 0.0
    %601 = vmatprep.subr.mxu0 0.0
    %602 = vmatpush1.msra.mxu0 0.0
    %603 = vmatprep.subr.mxu0 0.0
    %604 = vmatpush1.msra.mxu0 0.0
    %605 = vmatprep.subr.mxu0 0.0
    %606 = vmatpush1.msra.mxu0 0.0
    %607 = vmatprep.subr.mxu0 0.0
    %608 = vmatpush1.msra.mxu0 0.0
    %609 = vmatprep.subr.mxu0 0.0
    %610 = vmatpush1.msra.mxu0 0.0
    %611 = vmatprep.subr.mxu0 0.0
    %612 = vmatpush1.msra.mxu0 0.0
    %613 = vmatprep.subr.mxu0 0.0
    %614 = vmatpush1.msra.mxu0 0.0
    %615 = vmatprep.subr.mxu0 0.0
    %616 = vmatpush1.msra.mxu0 0.0
    %617 = vmatprep.subr.mxu0 0.0
    %618 = vmatpush1.msra.mxu0 0.0
    %619 = vmatprep.subr.mxu0 0.0
    %620 = vmatpush1.msra.mxu0 0.0
    %621 = vmatprep.subr.mxu0 0.0
    %622 = vmatpush1.msra.mxu0 0.0
    %623 = vmatprep.subr.mxu0 0.0
    %624 = vmatpush1.msra.mxu0 0.0
    %625 = vmatprep.subr.mxu0 0.0
    %626 = vmatpush1.msra.mxu0 0.0
    %627 = vmatprep.subr.mxu0 0.0
    %628 = vmatpush1.msra.mxu0 0.0
    %629 = vmatprep.subr.mxu0 0.0
    %630 = vmatpush1.msra.mxu0 0.0
    %631 = vmatprep.subr.mxu0 0.0
    %632 = vmatpush1.msra.mxu0 0.0
    %633 = vmatprep.subr.mxu0 0.0
    %634 = vmatpush1.msra.mxu0 0.0
    %635 = vmatprep.subr.mxu0 0.0
    %636 = vmatpush1.msra.mxu0 0.0
    %637 = vmatprep.subr.mxu0 0.0
    %638 = vmatpush1.msra.mxu0 0.0
    %639 = vmatprep.subr.mxu0 0.0
    %640 = vmatpush1.msra.mxu0 0.0
    %641 = vmatprep.mubr.f32.mxu0 0.0
    %642 = vmatmul.mubr.f32.gmra.mrb[0].mxu0 %v212
    %v643 = vpop.f32.mrb[0].mxu0
    %v644 = vadd.f32 0.0, %v643
    %v645 = vpop.f32.mrb[0].mxu0
    %646 = vmatprep.mubr.f32.mxu0 0.0
    %647 = vmatmul.mubr.f32.gmra.mrb[0].mxu0 %v215
    %v648 = vpop.f32.mrb[0].mxu0
    %v649 = vadd.f32 0.0, %v648
    %v650 = vpop.f32.mrb[0].mxu0
    %651 = vmatprep.mubr.f32.mxu0 0.0
    %652 = vmatmul.mubr.f32.gmra.mrb[0].mxu0 %v218
    %v653 = vpop.f32.mrb[0].mxu0
    %v654 = vadd.f32 0.0, %v653
    %v655 = vpop.f32.mrb[0].mxu0
    %656 = vmatprep.mubr.f32.mxu0 0.0
    %657 = vmatmul.mubr.f32.gmra.mrb[0].mxu0 %v221
    %v658 = vpop.f32.mrb[0].mxu0
    %v659 = vadd.f32 0.0, %v658
    %v660 = vpop.f32.mrb[0].mxu0
    %661 = vdwg.mxu0
    %s662 = scalar_lea.vmem %s1, 16
    %v663 = vld [vmem:[%s662] sm:$0xff]
    %v664 = vld [vmem:[%s662 + $0x8] sm:$0xff]
    %v665 = vadd.f32 %v644, %v663
    %v666 = vadd.f32 %v649, %v664
    %669 = vrot.lane.b32.xlu0 %v663, 32
    %v670 = vpop.permute.xlu0 %669
    %671 = vrot.lane.b32.xlu0 %v664, 32
    %v672 = vpop.permute.xlu0 %671
    %v675 = vadd.f32 %v654, %v670
    %v676 = vadd.f32 %v659, %v672
    %677 = vrot.lane.b32.xlu0 %v663, 64
    %v678 = vpop.permute.xlu0 %677
    %679 = vrot.lane.b32.xlu0 %v664, 64
    %v680 = vpop.permute.xlu0 %679
    %v683 = vadd.f32 %v654, %v678
    %v684 = vadd.f32 %v659, %v680
    %687 = vrot.lane.b32.xlu0 %v675, 96
    %v688 = vpop.permute.xlu0 %687
    %689 = vrot.lane.b32.xlu0 %v676, 96
    %v690 = vpop.permute.xlu0 %689
    %v693 = vadd.f32 %v665, %v688
    %v694 = vadd.f32 %v666, %v690
    %v695 = vsub.f32 0.0, %v693
    %v696 = vsub.f32 0.0, %v694
    %v697 = vmul.f32 %v695, 1.442695
    %v698 = vpow.pop %v697
    %v699 = vmul.f32 %v696, 1.442695
    %v700 = vpow.pop %v699
    %v701 = vadd.f32 %v698, 1.0
    %v702 = vadd.f32 %v700, 1.0
    %v703 = vrcp.pop %v701
    %v704 = vmul.f32 1.0, %v703
    %v705 = vrcp.pop %v702
    %v706 = vmul.f32 1.0, %v705
    %709 = vrot.lane.b32.xlu0 %v683, 64
    %v710 = vpop.permute.xlu0 %709
    %711 = vrot.lane.b32.xlu0 %v684, 64
    %v712 = vpop.permute.xlu0 %711
    %v715 = vmul.f32 %v704, %v710
    %v716 = vmul.f32 %v706, %v712
    %718 = vrot.lane.b32.xlu0 %v574, 32
    %v719 = vpop.permute.xlu0 %718
    %721 = vmatprep.subr.mxu0 0.0
    %722 = vmatpush1.msra.mxu0 %v715
    %723 = vmatprep.subr.mxu0 0.0
    %724 = vmatpush1.msra.mxu0 %v716
    %725 = vmatprep.subr.mxu0 0.0
    %726 = vmatpush1.msra.mxu0 0.0
    %727 = vmatprep.subr.mxu0 0.0
    %728 = vmatpush1.msra.mxu0 0.0
    %729 = vmatprep.subr.mxu0 0.0
    %730 = vmatpush1.msra.mxu0 0.0
    %731 = vmatprep.subr.mxu0 0.0
    %732 = vmatpush1.msra.mxu0 0.0
    %733 = vmatprep.subr.mxu0 0.0
    %734 = vmatpush1.msra.mxu0 0.0
    %735 = vmatprep.subr.mxu0 0.0
    %736 = vmatpush1.msra.mxu0 0.0
    %737 = vmatprep.subr.mxu0 0.0
    %738 = vmatpush1.msra.mxu0 0.0
    %739 = vmatprep.subr.mxu0 0.0
    %740 = vmatpush1.msra.mxu0 0.0
    %741 = vmatprep.subr.mxu0 0.0
    %742 = vmatpush1.msra.mxu0 0.0
    %743 = vmatprep.subr.mxu0 0.0
    %744 = vmatpush1.msra.mxu0 0.0
    %745 = vmatprep.subr.mxu0 0.0
    %746 = vmatpush1.msra.mxu0 0.0
    %747 = vmatprep.subr.mxu0 0.0
    %748 = vmatpush1.msra.mxu0 0.0
    %749 = vmatprep.subr.mxu0 0.0
    %750 = vmatpush1.msra.mxu0 0.0
    %751 = vmatprep.subr.mxu0 0.0
    %752 = vmatpush1.msra.mxu0 0.0
    %753 = vmatprep.subr.mxu0 0.0
    %754 = vmatpush1.msra.mxu0 0.0
    %755 = vmatprep.subr.mxu0 0.0
    %756 = vmatpush1.msra.mxu0 0.0
    %757 = vmatprep.subr.mxu0 0.0
    %758 = vmatpush1.msra.mxu0 0.0
    %759 = vmatprep.subr.mxu0 0.0
    %760 = vmatpush1.msra.mxu0 0.0
    %761 = vmatprep.subr.mxu0 0.0
    %762 = vmatpush1.msra.mxu0 0.0
    %763 = vmatprep.subr.mxu0 0.0
    %764 = vmatpush1.msra.mxu0 0.0
    %765 = vmatprep.subr.mxu0 0.0
    %766 = vmatpush1.msra.mxu0 0.0
    %767 = vmatprep.subr.mxu0 0.0
    %768 = vmatpush1.msra.mxu0 0.0
    %769 = vmatprep.subr.mxu0 0.0
    %770 = vmatpush1.msra.mxu0 0.0
    %771 = vmatprep.subr.mxu0 0.0
    %772 = vmatpush1.msra.mxu0 0.0
    %773 = vmatprep.subr.mxu0 0.0
    %774 = vmatpush1.msra.mxu0 0.0
    %775 = vmatprep.subr.mxu0 0.0
    %776 = vmatpush1.msra.mxu0 0.0
    %777 = vmatprep.subr.mxu0 0.0
    %778 = vmatpush1.msra.mxu0 0.0
    %779 = vmatprep.subr.mxu0 0.0
    %780 = vmatpush1.msra.mxu0 0.0
    %781 = vmatprep.subr.mxu0 0.0
    %782 = vmatpush1.msra.mxu0 0.0
    %783 = vmatprep.subr.mxu0 0.0
    %784 = vmatpush1.msra.mxu0 0.0
    %785 = vmatprep.mubr.f32.mxu0 0.0
    %786 = vmatmul.mubr.f32.gmra.mrb[0].mxu0 %v367
    %v787 = vpop.f32.mrb[0].mxu0
    %v788 = vadd.f32 %v719, %v787
    %v789 = vpop.f32.mrb[0].mxu0
    %790 = vdwg.mxu0
    %v791 = vsel %vm136, %v788, 0.0
    %792 = vadd.xlane.f32.xlu0 %v791
    %v793 = vpop.xlane.xlu0 %792
    %v794 = vmul.f32 %v793, %v442
    %v795 = vsub.f32 %v788, %v794
    %v796 = vmul.f32 %v795, %v795
    %v797 = vsel %vm136, %v796, 0.0
    %798 = vadd.xlane.f32.xlu0 %v797
    %v799 = vpop.xlane.xlu0 %798
    %v800 = vmul.f32 %v799, %v442
    %v801 = vadd.f32 %v800, 1e-05
    %v802 = vrsqrt.pop %v801
    %v803 = vmul.f32 %v795, %v802
    %s804 = scalar_lea.vmem %s8, 2
    %v805 = vld [vmem:[%s804] sm:$0x3]
    %v806 = vlaneseq
    %v807 = vshrl.u32 %v806, 7
    %v808 = vsub.s32 0, %v807
    %v809 = vrot.slane %v805, %v808
    %v810 = vmul.f32 %v803, %v809
    %v811 = vlaneseq
    %v812 = vshrl.u32 %v811, 7
    %v813 = vsub.s32 1, %v812
    %v814 = vrot.slane %v805, %v813
    %v815 = vadd.f32 %v810, %v814
    %v816 = vmul.f32 %v815, 0.5
    %v817 = vmul.f32 %v815, 0.70710677
    %vm818 = vcmp.ge.f32.partialorder %v817, 0.0
    %v819 = vsel %vm818, 1.0, -1.0
    %v820 = vand.u32 2147483647, %v817
    %v821 = vmul.f32 %v820, 0.3275911
    %v822 = vadd.f32 %v821, 1.0
    %v823 = vrcp.pop %v822
    %v824 = vmul.f32 1.0, %v823
    %v825 = vmul.f32 %v824, 1.0614054
    %v826 = vadd.f32 %v825, -1.4531521
    %v827 = vmul.f32 %v826, %v824
    %v828 = vadd.f32 %v827, 1.4214138
    %v829 = vmul.f32 %v828, %v824
    %v830 = vadd.f32 %v829, -0.28449672
    %v831 = vmul.f32 %v830, %v824
    %v832 = vadd.f32 %v831, 0.2548296
    %v833 = vmul.f32 %v832, %v824
    %v834 = vsub.f32 0.0, %v820
    %v835 = vmul.f32 %v834, %v820
    %v836 = vmul.f32 %v835, 1.442695
    %v837 = vpow.pop %v836
    %v838 = vmul.f32 %v833, %v837
    %v839 = vsub.f32 1.0, %v838
    %v840 = vmul.f32 %v819, %v839
    %v841 = vadd.f32 %v840, 1.0
    %v842 = vmul.f32 %v816, %v841
    %s843 = scalar_lea.vmem %s6, 64
    %v844 = vld [vmem:[%s843] sm:$0xff]
    %v845 = vld [vmem:[%s843 + $0x8] sm:$0xff]
    %v846 = vld [vmem:[%s843 + $0x10] sm:$0xff]
    %v847 = vld [vmem:[%s843 + $0x18] sm:$0xff]
    %s848 = scalar_lea.vmem %s7, 2
    %v849 = vld [vmem:[%s848] sm:$0x1]
    %v851 = vlaneseq
    %v852 = vshrl.u32 %v851, 7
    %v853 = vsub.s32 0, %v852
    %v854 = vrot.slane %v849, %v853
    %v857 = vsel %vm136, %v842, 0
    %859 = vmatprep.subr.mxu0 0.0
    %860 = vmatpush1.msra.mxu0 %v844
    %861 = vmatprep.subr.mxu0 0.0
    %862 = vmatpush1.msra.mxu0 %v845
    %863 = vmatprep.subr.mxu0 0.0
    %864 = vmatpush1.msra.mxu0 %v846
    %865 = vmatprep.subr.mxu0 0.0
    %866 = vmatpush1.msra.mxu0 %v847
    %867 = vmatprep.subr.mxu0 0.0
    %868 = vmatpush1.msra.mxu0 0.0
    %869 = vmatprep.subr.mxu0 0.0
    %870 = vmatpush1.msra.mxu0 0.0
    %871 = vmatprep.subr.mxu0 0.0
    %872 = vmatpush1.msra.mxu0 0.0
    %873 = vmatprep.subr.mxu0 0.0
    %874 = vmatpush1.msra.mxu0 0.0
    %875 = vmatprep.subr.mxu0 0.0
    %876 = vmatpush1.msra.mxu0 0.0
    %877 = vmatprep.subr.mxu0 0.0
    %878 = vmatpush1.msra.mxu0 0.0
    %879 = vmatprep.subr.mxu0 0.0
    %880 = vmatpush1.msra.mxu0 0.0
    %881 = vmatprep.subr.mxu0 0.0
    %882 = vmatpush1.msra.mxu0 0.0
    %883 = vmatprep.subr.mxu0 0.0
    %884 = vmatpush1.msra.mxu0 0.0
    %885 = vmatprep.subr.mxu0 0.0
    %886 = vmatpush1.msra.mxu0 0.0
    %887 = vmatprep.subr.mxu0 0.0
    %888 = vmatpush1.msra.mxu0 0.0
    %889 = vmatprep.subr.mxu0 0.0
    %890 = vmatpush1.msra.mxu0 0.0
    %891 = vmatprep.subr.mxu0 0.0
    %892 = vmatpush1.msra.mxu0 0.0
    %893 = vmatprep.subr.mxu0 0.0
    %894 = vmatpush1.msra.mxu0 0.0
    %895 = vmatprep.subr.mxu0 0.0
    %896 = vmatpush1.msra.mxu0 0.0
    %897 = vmatprep.subr.mxu0 0.0
    %898 = vmatpush1.msra.mxu0 0.0
    %899 = vmatprep.subr.mxu0 0.0
    %900 = vmatpush1.msra.mxu0 0.0
    %901 = vmatprep.subr.mxu0 0.0
    %902 = vmatpush1.msra.mxu0 0.0
    %903 = vmatprep.subr.mxu0 0.0
    %904 = vmatpush1.msra.mxu0 0.0
    %905 = vmatprep.subr.mxu0 0.0
    %906 = vmatpush1.msra.mxu0 0.0
    %907 = vmatprep.subr.mxu0 0.0
    %908 = vmatpush1.msra.mxu0 0.0
    %909 = vmatprep.subr.mxu0 0.0
    %910 = vmatpush1.msra.mxu0 0.0
    %911 = vmatprep.subr.mxu0 0.0
    %912 = vmatpush1.msra.mxu0 0.0
    %913 = vmatprep.subr.mxu0 0.0
    %914 = vmatpush1.msra.mxu0 0.0
    %915 = vmatprep.subr.mxu0 0.0
    %916 = vmatpush1.msra.mxu0 0.0
    %917 = vmatprep.subr.mxu0 0.0
    %918 = vmatpush1.msra.mxu0 0.0
    %919 = vmatprep.subr.mxu0 0.0
    %920 = vmatpush1.msra.mxu0 0.0
    %921 = vmatprep.subr.mxu0 0.0
    %922 = vmatpush1.msra.mxu0 0.0
    %923 = vmatprep.mubr.f32.mxu0 0.0
    %924 = vmatmul.mubr.f32.gmra.mrb[0].mxu0 %v857
    %v925 = vpop.f32.mrb[0].mxu0
    %v926 = vadd.f32 %v854, %v925
    %v927 = vpop.f32.mrb[0].mxu0
    %928 = vdwg.mxu0
    %929 = vmatprep.subr.mxu0 0.0
    %930 = vmatpush1.msra.mxu0 %v926
    %931 = vmatprep.subr.mxu0 0.0
    %932 = vmatpush1.msra.mxu0 0.0
    %933 = vmatprep.subr.mxu0 0.0
    %934 = vmatpush1.msra.mxu0 0.0
    %935 = vmatprep.subr.mxu0 0.0
    %936 = vmatpush1.msra.mxu0 0.0
    %937 = vmatprep.subr.mxu0 0.0
    %938 = vmatpush1.msra.mxu0 0.0
    %939 = vmatprep.subr.mxu0 0.0
    %940 = vmatpush1.msra.mxu0 0.0
    %941 = vmatprep.subr.mxu0 0.0
    %942 = vmatpush1.msra.mxu0 0.0
    %943 = vmatprep.subr.mxu0 0.0
    %944 = vmatpush1.msra.mxu0 0.0
    %945 = vmatprep.subr.mxu0 0.0
    %946 = vmatpush1.msra.mxu0 0.0
    %947 = vmatprep.subr.mxu0 0.0
    %948 = vmatpush1.msra.mxu0 0.0
    %949 = vmatprep.subr.mxu0 0.0
    %950 = vmatpush1.msra.mxu0 0.0
    %951 = vmatprep.subr.mxu0 0.0
    %952 = vmatpush1.msra.mxu0 0.0
    %953 = vmatprep.subr.mxu0 0.0
    %954 = vmatpush1.msra.mxu0 0.0
    %955 = vmatprep.subr.mxu0 0.0
    %956 = vmatpush1.msra.mxu0 0.0
    %957 = vmatprep.subr.mxu0 0.0
    %958 = vmatpush1.msra.mxu0 0.0
    %959 = vmatprep.subr.mxu0 0.0
    %960 = vmatpush1.msra.mxu0 0.0
    %961 = vmatprep.subr.mxu0 0.0
    %962 = vmatpush1.msra.mxu0 0.0
    %963 = vmatprep.subr.mxu0 0.0
    %964 = vmatpush1.msra.mxu0 0.0
    %965 = vmatprep.subr.mxu0 0.0
    %966 = vmatpush1.msra.mxu0 0.0
    %967 = vmatprep.subr.mxu0 0.0
    %968 = vmatpush1.msra.mxu0 0.0
    %969 = vmatprep.subr.mxu0 0.0
    %970 = vmatpush1.msra.mxu0 0.0
    %971 = vmatprep.subr.mxu0 0.0
    %972 = vmatpush1.msra.mxu0 0.0
    %973 = vmatprep.subr.mxu0 0.0
    %974 = vmatpush1.msra.mxu0 0.0
    %975 = vmatprep.subr.mxu0 0.0
    %976 = vmatpush1.msra.mxu0 0.0
    %977 = vmatprep.subr.mxu0 0.0
    %978 = vmatpush1.msra.mxu0 0.0
    %979 = vmatprep.subr.mxu0 0.0
    %980 = vmatpush1.msra.mxu0 0.0
    %981 = vmatprep.subr.mxu0 0.0
    %982 = vmatpush1.msra.mxu0 0.0
    %983 = vmatprep.subr.mxu0 0.0
    %984 = vmatpush1.msra.mxu0 0.0
    %985 = vmatprep.subr.mxu0 0.0
    %986 = vmatpush1.msra.mxu0 0.0
    %987 = vmatprep.subr.mxu0 0.0
    %988 = vmatpush1.msra.mxu0 0.0
    %989 = vmatprep.subr.mxu0 0.0
    %990 = vmatpush1.msra.mxu0 0.0
    %991 = vmatprep.subr.mxu0 0.0
    %992 = vmatpush1.msra.mxu0 0.0
    %993 = vmatprep.mubr.f32.mxu0 0.0
    %994 = vmatmul.mubr.f32.gmra.mrb[0].mxu0 %v212
    %v995 = vpop.f32.mrb[0].mxu0
    %v996 = vadd.f32 0.0, %v995
    %v997 = vpop.f32.mrb[0].mxu0
    %998 = vmatprep.mubr.f32.mxu0 0.0
    %999 = vmatmul.mubr.f32.gmra.mrb[0].mxu0 %v215
    %v1000 = vpop.f32.mrb[0].mxu0
    %v1001 = vadd.f32 0.0, %v1000
    %v1002 = vpop.f32.mrb[0].mxu0
    %1003 = vmatprep.mubr.f32.mxu0 0.0
    %1004 = vmatmul.mubr.f32.gmra.mrb[0].mxu0 %v218
    %v1005 = vpop.f32.mrb[0].mxu0
    %v1006 = vadd.f32 0.0, %v1005
    %v1007 = vpop.f32.mrb[0].mxu0
    %1008 = vmatprep.mubr.f32.mxu0 0.0
    %1009 = vmatmul.mubr.f32.gmra.mrb[0].mxu0 %v221
    %v1010 = vpop.f32.mrb[0].mxu0
    %v1011 = vadd.f32 0.0, %v1010
    %v1012 = vpop.f32.mrb[0].mxu0
    %1013 = vdwg.mxu0
    %s1014 = scalar_lea.vmem %s1, 32
    %v1015 = vld [vmem:[%s1014] sm:$0xff]
    %v1016 = vld [vmem:[%s1014 + $0x8] sm:$0xff]
    %v1017 = vadd.f32 %v996, %v1015
    %v1018 = vadd.f32 %v1001, %v1016
    %1021 = vrot.lane.b32.xlu0 %v1015, 32
    %v1022 = vpop.permute.xlu0 %1021
    %1023 = vrot.lane.b32.xlu0 %v1016, 32
    %v1024 = vpop.permute.xlu0 %1023
    %v1027 = vadd.f32 %v1006, %v1022
    %v1028 = vadd.f32 %v1011, %v1024
    %1029 = vrot.lane.b32.xlu0 %v1015, 64
    %v1030 = vpop.permute.xlu0 %1029
    %1031 = vrot.lane.b32.xlu0 %v1016, 64
    %v1032 = vpop.permute.xlu0 %1031
    %v1035 = vadd.f32 %v1006, %v1030
    %v1036 = vadd.f32 %v1011, %v1032
    %1039 = vrot.lane.b32.xlu0 %v1027, 96
    %v1040 = vpop.permute.xlu0 %1039
    %1041 = vrot.lane.b32.xlu0 %v1028, 96
    %v1042 = vpop.permute.xlu0 %1041
    %v1045 = vadd.f32 %v1017, %v1040
    %v1046 = vadd.f32 %v1018, %v1042
    %v1047 = vsub.f32 0.0, %v1045
    %v1048 = vsub.f32 0.0, %v1046
    %v1049 = vmul.f32 %v1047, 1.442695
    %v1050 = vpow.pop %v1049
    %v1051 = vmul.f32 %v1048, 1.442695
    %v1052 = vpow.pop %v1051
    %v1053 = vadd.f32 %v1050, 1.0
    %v1054 = vadd.f32 %v1052, 1.0
    %v1055 = vrcp.pop %v1053
    %v1056 = vmul.f32 1.0, %v1055
    %v1057 = vrcp.pop %v1054
    %v1058 = vmul.f32 1.0, %v1057
    %1061 = vrot.lane.b32.xlu0 %v1035, 64
    %v1062 = vpop.permute.xlu0 %1061
    %1063 = vrot.lane.b32.xlu0 %v1036, 64
    %v1064 = vpop.permute.xlu0 %1063
    %v1067 = vmul.f32 %v1056, %v1062
    %v1068 = vmul.f32 %v1058, %v1064
    %1070 = vrot.lane.b32.xlu0 %v926, 32
    %v1071 = vpop.permute.xlu0 %1070
    %1073 = vmatprep.subr.mxu0 0.0
    %1074 = vmatpush1.msra.mxu0 %v1067
    %1075 = vmatprep.subr.mxu0 0.0
    %1076 = vmatpush1.msra.mxu0 %v1068
    %1077 = vmatprep.subr.mxu0 0.0
    %1078 = vmatpush1.msra.mxu0 0.0
    %1079 = vmatprep.subr.mxu0 0.0
    %1080 = vmatpush1.msra.mxu0 0.0
    %1081 = vmatprep.subr.mxu0 0.0
    %1082 = vmatpush1.msra.mxu0 0.0
    %1083 = vmatprep.subr.mxu0 0.0
    %1084 = vmatpush1.msra.mxu0 0.0
    %1085 = vmatprep.subr.mxu0 0.0
    %1086 = vmatpush1.msra.mxu0 0.0
    %1087 = vmatprep.subr.mxu0 0.0
    %1088 = vmatpush1.msra.mxu0 0.0
    %1089 = vmatprep.subr.mxu0 0.0
    %1090 = vmatpush1.msra.mxu0 0.0
    %1091 = vmatprep.subr.mxu0 0.0
    %1092 = vmatpush1.msra.mxu0 0.0
    %1093 = vmatprep.subr.mxu0 0.0
    %1094 = vmatpush1.msra.mxu0 0.0
    %1095 = vmatprep.subr.mxu0 0.0
    %1096 = vmatpush1.msra.mxu0 0.0
    %1097 = vmatprep.subr.mxu0 0.0
    %1098 = vmatpush1.msra.mxu0 0.0
    %1099 = vmatprep.subr.mxu0 0.0
    %1100 = vmatpush1.msra.mxu0 0.0
    %1101 = vmatprep.subr.mxu0 0.0
    %1102 = vmatpush1.msra.mxu0 0.0
    %1103 = vmatprep.subr.mxu0 0.0
    %1104 = vmatpush1.msra.mxu0 0.0
    %1105 = vmatprep.subr.mxu0 0.0
    %1106 = vmatpush1.msra.mxu0 0.0
    %1107 = vmatprep.subr.mxu0 0.0
    %1108 = vmatpush1.msra.mxu0 0.0
    %1109 = vmatprep.subr.mxu0 0.0
    %1110 = vmatpush1.msra.mxu0 0.0
    %1111 = vmatprep.subr.mxu0 0.0
    %1112 = vmatpush1.msra.mxu0 0.0
    %1113 = vmatprep.subr.mxu0 0.0
    %1114 = vmatpush1.msra.mxu0 0.0
    %1115 = vmatprep.subr.mxu0 0.0
    %1116 = vmatpush1.msra.mxu0 0.0
    %1117 = vmatprep.subr.mxu0 0.0
    %1118 = vmatpush1.msra.mxu0 0.0
    %1119 = vmatprep.subr.mxu0 0.0
    %1120 = vmatpush1.msra.mxu0 0.0
    %1121 = vmatprep.subr.mxu0 0.0
    %1122 = vmatpush1.msra.mxu0 0.0
    %1123 = vmatprep.subr.mxu0 0.0
    %1124 = vmatpush1.msra.mxu0 0.0
    %1125 = vmatprep.subr.mxu0 0.0
    %1126 = vmatpush1.msra.mxu0 0.0
    %1127 = vmatprep.subr.mxu0 0.0
    %1128 = vmatpush1.msra.mxu0 0.0
    %1129 = vmatprep.subr.mxu0 0.0
    %1130 = vmatpush1.msra.mxu0 0.0
    %1131 = vmatprep.subr.mxu0 0.0
    %1132 = vmatpush1.msra.mxu0 0.0
    %1133 = vmatprep.subr.mxu0 0.0
    %1134 = vmatpush1.msra.mxu0 0.0
    %1135 = vmatprep.subr.mxu0 0.0
    %1136 = vmatpush1.msra.mxu0 0.0
    %1137 = vmatprep.mubr.f32.mxu0 0.0
    %1138 = vmatmul.mubr.f32.gmra.mrb[0].mxu0 %v367
    %v1139 = vpop.f32.mrb[0].mxu0
    %v1140 = vadd.f32 %v1071, %v1139
    %v1141 = vpop.f32.mrb[0].mxu0
    %1142 = vdwg.mxu0
    %v1143 = vsel %vm136, %v1140, 0.0
    %1144 = vadd.xlane.f32.xlu0 %v1143
    %v1145 = vpop.xlane.xlu0 %1144
    %v1146 = vmul.f32 %v1145, %v442
    %v1147 = vsub.f32 %v1140, %v1146
    %v1148 = vmul.f32 %v1147, %v1147
    %v1149 = vsel %vm136, %v1148, 0.0
    %1150 = vadd.xlane.f32.xlu0 %v1149
    %v1151 = vpop.xlane.xlu0 %1150
    %v1152 = vmul.f32 %v1151, %v442
    %v1153 = vadd.f32 %v1152, 1e-05
    %v1154 = vrsqrt.pop %v1153
    %v1155 = vmul.f32 %v1147, %v1154
    %s1156 = scalar_lea.vmem %s8, 4
    %v1157 = vld [vmem:[%s1156] sm:$0x3]
    %v1158 = vlaneseq
    %v1159 = vshrl.u32 %v1158, 7
    %v1160 = vsub.s32 0, %v1159
    %v1161 = vrot.slane %v1157, %v1160
    %v1162 = vmul.f32 %v1155, %v1161
    %v1163 = vlaneseq
    %v1164 = vshrl.u32 %v1163, 7
    %v1165 = vsub.s32 1, %v1164
    %v1166 = vrot.slane %v1157, %v1165
    %v1167 = vadd.f32 %v1162, %v1166
    %v1168 = vmul.f32 %v1167, 0.5
    %v1169 = vmul.f32 %v1167, 0.70710677
    %vm1170 = vcmp.ge.f32.partialorder %v1169, 0.0
    %v1171 = vsel %vm1170, 1.0, -1.0
    %v1172 = vand.u32 2147483647, %v1169
    %v1173 = vmul.f32 %v1172, 0.3275911
    %v1174 = vadd.f32 %v1173, 1.0
    %v1175 = vrcp.pop %v1174
    %v1176 = vmul.f32 1.0, %v1175
    %v1177 = vmul.f32 %v1176, 1.0614054
    %v1178 = vadd.f32 %v1177, -1.4531521
    %v1179 = vmul.f32 %v1178, %v1176
    %v1180 = vadd.f32 %v1179, 1.4214138
    %v1181 = vmul.f32 %v1180, %v1176
    %v1182 = vadd.f32 %v1181, -0.28449672
    %v1183 = vmul.f32 %v1182, %v1176
    %v1184 = vadd.f32 %v1183, 0.2548296
    %v1185 = vmul.f32 %v1184, %v1176
    %v1186 = vsub.f32 0.0, %v1172
    %v1187 = vmul.f32 %v1186, %v1172
    %v1188 = vmul.f32 %v1187, 1.442695
    %v1189 = vpow.pop %v1188
    %v1190 = vmul.f32 %v1185, %v1189
    %v1191 = vsub.f32 1.0, %v1190
    %v1192 = vmul.f32 %v1171, %v1191
    %v1193 = vadd.f32 %v1192, 1.0
    %v1194 = vmul.f32 %v1168, %v1193
    %v1195 = vld [vmem:[%s9] sm:$0xff]
    %v1196 = vld [vmem:[%s9 + $0x8] sm:$0xff]
    %v1197 = vld [vmem:[%s9 + $0x10] sm:$0xff]
    %v1198 = vld [vmem:[%s9 + $0x18] sm:$0xff]
    %v1200 = vsel %vm136, %v1194, 0
    %1202 = vmatprep.subr.mxu0 0.0
    %1203 = vmatpush1.msra.mxu0 %v1195
    %1204 = vmatprep.subr.mxu0 0.0
    %1205 = vmatpush1.msra.mxu0 %v1196
    %1206 = vmatprep.subr.mxu0 0.0
    %1207 = vmatpush1.msra.mxu0 %v1197
    %1208 = vmatprep.subr.mxu0 0.0
    %1209 = vmatpush1.msra.mxu0 %v1198
    %1210 = vmatprep.subr.mxu0 0.0
    %1211 = vmatpush1.msra.mxu0 0.0
    %1212 = vmatprep.subr.mxu0 0.0
    %1213 = vmatpush1.msra.mxu0 0.0
    %1214 = vmatprep.subr.mxu0 0.0
    %1215 = vmatpush1.msra.mxu0 0.0
    %1216 = vmatprep.subr.mxu0 0.0
    %1217 = vmatpush1.msra.mxu0 0.0
    %1218 = vmatprep.subr.mxu0 0.0
    %1219 = vmatpush1.msra.mxu0 0.0
    %1220 = vmatprep.subr.mxu0 0.0
    %1221 = vmatpush1.msra.mxu0 0.0
    %1222 = vmatprep.subr.mxu0 0.0
    %1223 = vmatpush1.msra.mxu0 0.0
    %1224 = vmatprep.subr.mxu0 0.0
    %1225 = vmatpush1.msra.mxu0 0.0
    %1226 = vmatprep.subr.mxu0 0.0
    %1227 = vmatpush1.msra.mxu0 0.0
    %1228 = vmatprep.subr.mxu0 0.0
    %1229 = vmatpush1.msra.mxu0 0.0
    %1230 = vmatprep.subr.mxu0 0.0
    %1231 = vmatpush1.msra.mxu0 0.0
    %1232 = vmatprep.subr.mxu0 0.0
    %1233 = vmatpush1.msra.mxu0 0.0
    %1234 = vmatprep.subr.mxu0 0.0
    %1235 = vmatpush1.msra.mxu0 0.0
    %1236 = vmatprep.subr.mxu0 0.0
    %1237 = vmatpush1.msra.mxu0 0.0
    %1238 = vmatprep.subr.mxu0 0.0
    %1239 = vmatpush1.msra.mxu0 0.0
    %1240 = vmatprep.subr.mxu0 0.0
    %1241 = vmatpush1.msra.mxu0 0.0
    %1242 = vmatprep.subr.mxu0 0.0
    %1243 = vmatpush1.msra.mxu0 0.0
    %1244 = vmatprep.subr.mxu0 0.0
    %1245 = vmatpush1.msra.mxu0 0.0
    %1246 = vmatprep.subr.mxu0 0.0
    %1247 = vmatpush1.msra.mxu0 0.0
    %1248 = vmatprep.subr.mxu0 0.0
    %1249 = vmatpush1.msra.mxu0 0.0
    %1250 = vmatprep.subr.mxu0 0.0
    %1251 = vmatpush1.msra.mxu0 0.0
    %1252 = vmatprep.subr.mxu0 0.0
    %1253 = vmatpush1.msra.mxu0 0.0
    %1254 = vmatprep.subr.mxu0 0.0
    %1255 = vmatpush1.msra.mxu0 0.0
    %1256 = vmatprep.subr.mxu0 0.0
    %1257 = vmatpush1.msra.mxu0 0.0
    %1258 = vmatprep.subr.mxu0 0.0
    %1259 = vmatpush1.msra.mxu0 0.0
    %1260 = vmatprep.subr.mxu0 0.0
    %1261 = vmatpush1.msra.mxu0 0.0
    %1262 = vmatprep.subr.mxu0 0.0
    %1263 = vmatpush1.msra.mxu0 0.0
    %1264 = vmatprep.subr.mxu0 0.0
    %1265 = vmatpush1.msra.mxu0 0.0
    %1266 = vmatprep.mubr.f32.mxu0 0.0
    %1267 = vmatmul.mubr.f32.gmra.mrb[0].mxu0 %v1200
    %v1268 = vpop.f32.mrb[0].mxu0
    %v1269 = vadd.f32 0.0, %v1268
    %v1270 = vpop.f32.mrb[0].mxu0
    %1271 = vdwg.mxu0
    %1272 = vst [vmem:[#allocation2] sm:$0xff] %v1269
    // Predicated region
    $region42: #{joiner_forward.1} parent=1 // pred_check
      _
    $region43: #{joiner_forward.1} parent=1 // pred_check_branch
      %1274 = sbr.rel (0) target = $region45
    $region44: #{joiner_forward.1} parent=1 // pred_region
      %s1276 = ssub.s32 128, 128
      %1277 = vsyncadd [#allocation3], %s1276
      %s1279 = sshll.u32 [#allocation2], 4
      %s1280 = int_to_ptr.vmem [resolvable:$true] %s1279
      %1282 = dma.vmem_to_hbm [thread:$0]  %s1280, 128, %s10, [#allocation3]
    $region45: #{joiner_forward.1} parent=1 // pred_fallthru
      _
    // Predicated region
    $region46: #{joiner_forward.1} parent=1 // pred_check
      _
    $region47: #{joiner_forward.1} parent=1 // pred_check_branch
      %1284 = sbr.rel (0) target = $region49
    $region48: #{joiner_forward.1} parent=1 // pred_region
      %1285 = dma.done [#allocation3], 128
    $region49: #{joiner_forward.1} parent=1 // pred_fallthru
      _
    %1286 = vsyncpa [#allocation3], 1

</llo_original>
